<compile_context>
chip_gen: v7x
topology: tpu7x:2x2x1
jax: 0.10.0
libtpu: 0.0.40
codegen_flags: <defaults>
</compile_context>

<pallas_src>
import functools

import jax
import jax.numpy as jnp
from jax import lax
from jax.experimental import pallas as pl
from jax.experimental.pallas import tpu as pltpu


def _lane_pad(c):
    """VMEM rows occupy full 128-lane tiles; estimates must account for that."""
    return -(-c // 128) * 128


def _rpn_head_kernel(x_ref, w3_ref, b3_ref, wh_ref, bh_ref, out_ref, *, w_pad_cols):
    # x_ref:   (R, Cin)          f32  -- R = bands_per_step * r_band flattened padded rows
    # w3_ref:  (3, 3*Cin, Chid)  bf16 -- 3x3 conv weight, one (dx, cin)-ordered block per dy
    # b3_ref:  (1, Chid)         f32
    # wh_ref:  (Chid, Cpad)      bf16 -- fused objectness|bbox 1x1 weights, zero-padded lanes
    # bh_ref:  (1, Cpad)         f32
    # out_ref: (R, Cpad)         f32
    x = x_ref[...]
    n_rows = x.shape[0]

    # 3x3 conv with taps folded into the MXU contraction dim.  Output row r, tap
    # (dy, dx) needs flattened padded row r + dy*(W+2) + dx, i.e. a pure sublane
    # rotation (XLU) of the block.  Taps are grouped per dy (K = 3*Cin per matmul)
    # and the three partial products accumulate in f32, so the peak materialized
    # im2col is only (R, 3*Cin) bf16.  Wrap-around / cross-band reads only hit junk
    # rows (x' >= W, y' >= band_h, or row padding) that the wrapper discards.
    h = None
    for dy in range(3):
        pieces = []
        for dx in range(3):
            s = dy * w_pad_cols + dx
            p = x if s == 0 else pltpu.roll(x, shift=(n_rows - s) % n_rows, axis=0)
            pieces.append(p.astype(jnp.bfloat16))          # cast after the f32 roll
        patches = jnp.concatenate(pieces, axis=1)          # (R, 3*Cin) bf16
        part = jnp.dot(patches, w3_ref[dy], preferred_element_type=jnp.float32)
        h = part if h is None else h + part
    h = jnp.maximum(h + b3_ref[...], 0.0)                  # bias + ReLU in f32 (v5e-safe)

    # Fused lane-dense 1x1 heads: objectness | bbox | zero-pad in one matmul + one
    # unmasked full-lane store.
    out = jnp.dot(h.astype(jnp.bfloat16), wh_ref[...], preferred_element_type=jnp.float32)
    out_ref[...] = (out + bh_ref[...]).astype(out_ref.dtype)


def _vmem_budget_bytes():
    """~75% of physical VMEM per TensorCore (generation-aware, conservative fallback)."""
    phys = 64 * 1024 * 1024                      # v7x per-core VMEM (smallest current gen)
    try:
        phys = int(getattr(pltpu.get_tpu_info(), "vmem_capacity_bytes", phys))
    except Exception:
        pass                                      # keep conservative fallback
    return (3 * phys) // 4


def _block_row_bytes(cin, chid, cout_pad):
    """Estimated live VMEM bytes per flattened row, including (8,128) tile padding."""
    return (2 * 4 * _lane_pad(cin)                # input block, f32, double-buffered
            + 2 * 4 * _lane_pad(cout_pad)         # output block, f32, double-buffered
            + 2 * 2 * _lane_pad(3 * cin)          # bf16 tap pieces + per-dy concat
            + (4 + 2) * _lane_pad(chid))          # hidden activations f32 + bf16


def _choose_tiling(n, h, w, cin, chid, cout_pad, budget):
    """Pick (band_h, n_bands, r_band, bands_per_step, row_bytes) for the row-band grid."""
    target = max(budget // 3, 1 << 20)            # ~1/3 of the scoped budget per step
    row_bytes = _block_row_bytes(cin, chid, cout_pad)
    max_rows = max(target // row_bytes, 8)

    def band_rows(bh):                            # sublane-aligned rows per (band + halo)
        return -(-((bh + 2) * (w + 2)) // 8) * 8

    band_h = h
    while band_h > 1 and band_rows(band_h) > max_rows:
        band_h = -(-band_h // 2)
    n_bands = -(-h // band_h)
    # Guarantee >= 2 grid blocks even at N == 1 (megacore split / DMA-compute overlap).
    if n * n_bands < 2 and h > 1:
        band_h = -(-h // 2)
        n_bands = -(-h // band_h)
    r_band = band_rows(band_h)

    n_blocks = n * n_bands
    min_steps = 2 if n_blocks >= 2 else 1
    bands_per_step = 1
    for d in range(1, n_blocks + 1):              # batch small bands/images per grid step
        if (n_blocks % d == 0 and d * r_band * row_bytes <= target
                and n_blocks // d >= min_steps):
            bands_per_step = d
    return band_h, n_bands, r_band, bands_per_step, row_bytes


def _rpn_head_single_level(x_nchw, params):
    """RPN head on one feature level. x_nchw: (N, Cin, H, W) f32 -> (obj, box) NCHW."""
    w3, b3, wh, bh, num_anchors = params
    n, cin, h, w = x_nchw.shape
    chid = w3.shape[-1]
    cout_pad = wh.shape[1]
    cout = 5 * num_anchors

    budget = _vmem_budget_bytes()
    band_h, n_bands, r_band, bands_per_step, row_bytes = _choose_tiling(
        n, h, w, cin, chid, cout_pad, budget)

    # Valid output rows of a band never read (via the max tap shift 2*(W+2)+2) past
    # that band's own padded row block -- this is what makes cross-band/cross-image
    # roll wrap-around safe.  Pin the invariant so future tiling changes can't
    # silently corrupt edge pixels.
    assert (band_h - 1) * (w + 2) + (w - 1) + 2 * (w + 2) + 2 < r_band

    # Layout plumbing (one fused XLA gather pass): NCHW -> NHWC, halo pad,
    # overlapping row bands, flatten to (rows, Cin).
    h_top = n_bands * band_h
    x_nhwc = jnp.transpose(x_nchw, (0, 2, 3, 1))
    x_p = jnp.pad(x_nhwc, ((0, 0), (1, 1 + h_top - h), (1, 1), (0, 0)))
    if n_bands == 1:
        bands = x_p[:, None]
    else:
        bands = jnp.stack(
            [x_p[:, b * band_h: b * band_h + band_h + 2] for b in range(n_bands)],
            axis=1)
    r_full = (band_h + 2) * (w + 2)
    x_flat = bands.reshape(n, n_bands, r_full, cin)
    if r_band != r_full:
        x_flat = jnp.pad(x_flat, ((0, 0), (0, 0), (0, r_band - r_full), (0, 0)))
    x2d = x_flat.reshape(n * n_bands * r_band, cin)

    n_blocks = n * n_bands
    block_rows = bands_per_step * r_band
    grid = (n_blocks // bands_per_step,)

    # Raise the scoped-VMEM cap whenever the tile-padded working set approaches the
    # smallest default scoped limit (16 MiB on v5e); cap at ~75% of physical VMEM.
    w_bytes = 2 * 2 * (3 * (-(-3 * cin // 16) * 16) * _lane_pad(chid)
                       + (-(-chid // 16) * 16) * _lane_pad(cout_pad))
    vmem_est = block_rows * row_bytes + w_bytes + (1 << 20)
    cp = {"dimension_semantics": ("parallel",)}
    if vmem_est > 12 * 1024 * 1024:
        cp["vmem_limit_bytes"] = int(min(max(int(1.25 * vmem_est), 16 << 20), budget))

    out2d = pl.pallas_call(
        functools.partial(_rpn_head_kernel, w_pad_cols=w + 2),
        out_shape=jax.ShapeDtypeStruct((n_blocks * r_band, cout_pad), jnp.float32),
        grid_spec=pltpu.PrefetchScalarGridSpec(
            num_scalar_prefetch=0,
            grid=grid,
            in_specs=[
                pl.BlockSpec((block_rows, cin), lambda i: (i, 0)),
                pl.BlockSpec((3, 3 * cin, chid), lambda i: (0, 0, 0)),
                pl.BlockSpec((1, chid), lambda i: (0, 0)),
                pl.BlockSpec((chid, cout_pad), lambda i: (0, 0)),
                pl.BlockSpec((1, cout_pad), lambda i: (0, 0)),
            ],
            out_specs=pl.BlockSpec((block_rows, cout_pad), lambda i: (i, 0)),
        ),
        compiler_params=pltpu.CompilerParams(**cp),
    )(x2d, w3, b3, wh, bh)

    # Drop junk rows/cols (W halo, band halo, sublane padding, lane padding), split
    # the fused head, return NCHW to match the PyTorch module.
    out = out2d.reshape(n, n_bands, r_band, cout_pad)[:, :, : band_h * (w + 2), :cout]
    out = out.reshape(n, h_top, w + 2, cout)[:, :h, :w, :]
    obj = jnp.transpose(out[..., :num_anchors], (0, 3, 1, 2))
    box = jnp.transpose(out[..., num_anchors:], (0, 3, 1, 2))
    return obj, box


def rpn_head_forward(features, params):
    """features: list of (N, Cin, H, W) arrays. Returns (objectness, bbox_pred) lists."""
    objectness, bbox_pred = [], []
    for feat in features:
        o, b = _rpn_head_single_level(feat, params)
        objectness.append(o)
        bbox_pred.append(b)
    return objectness, bbox_pred


def init_rpn_params(key, in_channels, hidden_channels, num_anchors):
    """f32 torch-layout parameters (what the nn.Conv2d layers would hold)."""
    k1, k2, k3, k4, k5, k6 = jax.random.split(key, 6)
    conv_w = 0.1 * jax.random.normal(
        k1, (hidden_channels, in_channels, 3, 3), jnp.float32)
    conv_b = 0.1 * jax.random.normal(k2, (hidden_channels,), jnp.float32)
    obj_w = 0.1 * jax.random.normal(k3, (num_anchors, hidden_channels), jnp.float32)
    obj_b = 0.1 * jax.random.normal(k4, (num_anchors,), jnp.float32)
    box_w = 0.1 * jax.random.normal(k5, (4 * num_anchors, hidden_channels), jnp.float32)
    box_b = 0.1 * jax.random.normal(k6, (4 * num_anchors,), jnp.float32)
    return conv_w, conv_b, obj_w, obj_b, box_w, box_b


def pack_rpn_params(torch_params):
    """Torch-layout f32 -> kernel layout (bf16 MXU weights, f32 biases, fused lane-dense head)."""
    conv_w, conv_b, obj_w, obj_b, box_w, box_b = torch_params
    chid, cin = conv_w.shape[0], conv_w.shape[1]
    num_anchors = obj_w.shape[0]
    cout = 5 * num_anchors
    cout_pad = -(-cout // 128) * 128
    # (Chid, Cin, 3, 3) -> (dy, dx*Cin, Chid): one MXU weight block per dy row group,
    # matching the tap/channel order used to build the kernel's per-dy patches.
    w3 = jnp.transpose(conv_w, (2, 3, 1, 0)).reshape(3, 3 * cin, chid).astype(jnp.bfloat16)
    b3 = conv_b.reshape(1, chid).astype(jnp.float32)
    # Fused 1x1 heads (objectness | bbox), zero-padded at pack time to a 128-lane
    # multiple so the kernel store is lane-dense and no bf16 VPU ops are needed.
    wh = jnp.concatenate([obj_w.T, box_w.T], axis=1)
    wh = jnp.pad(wh, ((0, 0), (0, cout_pad - cout))).astype(jnp.bfloat16)
    bh = jnp.concatenate([obj_b, box_b]).reshape(1, -1)
    bh = jnp.pad(bh, ((0, 0), (0, cout_pad - cout))).astype(jnp.float32)
    return w3, b3, wh, bh, num_anchors


def _reference_single_level(x_nchw, torch_params):
    """Pure-JAX f32 NCHW reference mirroring the PyTorch module."""
    conv_w, conv_b, obj_w, obj_b, box_w, box_b = torch_params
    dn = lax.conv_dimension_numbers(x_nchw.shape, conv_w.shape, ("NCHW", "OIHW", "NCHW"))
    t = lax.conv_general_dilated(x_nchw, conv_w, (1, 1), "SAME", dimension_numbers=dn)
    t = jnp.maximum(t + conv_b[None, :, None, None], 0.0)
    obj = jnp.einsum("nchw,ac->nahw", t, obj_w) + obj_b[None, :, None, None]
    box = jnp.einsum("nchw,ac->nahw", t, box_w) + box_b[None, :, None, None]
    return obj, box


if __name__ == "__main__":
    key = jax.random.PRNGKey(0)
    in_channels, hidden_channels, num_anchors = 4, 32, 3

    kp, kf1, kf2, kf3 = jax.random.split(key, 4)
    torch_params = init_rpn_params(kp, in_channels, hidden_channels, num_anchors)
    kernel_params = pack_rpn_params(torch_params)

    # FPN-style feature levels (NCHW, as the PyTorch module expects).  The last one
    # uses N == 1 to exercise the forced row-band split / halo path.
    features = [
        jax.random.normal(kf1, (2, in_channels, 16, 16), jnp.float32),
        jax.random.normal(kf2, (2, in_channels, 8, 8), jnp.float32),
        jax.random.normal(kf3, (1, in_channels, 16, 16), jnp.float32),
    ]

    objectness, bbox_pred = rpn_head_forward(features, kernel_params)
    jax.block_until_ready(objectness)
    jax.block_until_ready(bbox_pred)

    # Correctness check against a pure-f32 convolution reference (bf16 MXU matmuls
    # with f32 accumulation in the kernel -> loosened tolerance).
    for feat, o, b in zip(features, objectness, bbox_pred):
        o_ref, b_ref = _reference_single_level(feat, torch_params)
        assert o.shape == o_ref.shape and b.shape == b_ref.shape
        assert jnp.allclose(o, o_ref, atol=2e-2, rtol=2e-2), \
            float(jnp.max(jnp.abs(o - o_ref)))
        assert jnp.allclose(b, b_ref, atol=2e-2, rtol=2e-2), \
            float(jnp.max(jnp.abs(b - b_ref)))

    print("KERNEL_OK")
</pallas_src>

<mosaic_0001>
module attributes {stable_mosaic.version = 11 : i64} {
  func.func @_rpn_head_kernel(%arg0: i32, %arg1: memref<328x4xf32, #tpu.memory_space<vmem>>, %arg2: memref<3x12x32xbf16, #tpu.memory_space<vmem>>, %arg3: memref<1x32xf32, #tpu.memory_space<vmem>>, %arg4: memref<32x128xbf16, #tpu.memory_space<vmem>>, %arg5: memref<1x128xf32, #tpu.memory_space<vmem>>, %arg6: memref<328x128xf32, #tpu.memory_space<vmem>>) attributes {dimension_semantics = [#tpu.dimension_semantics<parallel>], iteration_bounds = array<i64: 2>, scalar_prefetch = 0 : i64, scratch_operands = 0 : i64, tpu.core_type = #tpu.core_type<tc>, window_params = [{transform_indices = @transform_0, window_bounds = array<i64: 328, 4>}, {pipeline_mode = #tpu.pipeline_mode<synchronous>, transform_indices = @transform_1, window_bounds = array<i64: 3, 12, 32>}, {pipeline_mode = #tpu.pipeline_mode<synchronous>, transform_indices = @transform_2, window_bounds = array<i64: 1, 32>}, {pipeline_mode = #tpu.pipeline_mode<synchronous>, transform_indices = @transform_3, window_bounds = array<i64: 32, 128>}, {pipeline_mode = #tpu.pipeline_mode<synchronous>, transform_indices = @transform_4, window_bounds = array<i64: 1, 128>}, {transform_indices = @transform_5, window_bounds = array<i64: 328, 128>}]} {
    %c0 = arith.constant 0 : index
    %c0_0 = arith.constant 0 : index
    %0 = vector.load %arg1[%c0, %c0_0] : memref<328x4xf32, #tpu.memory_space<vmem>>, vector<328x4xf32>
    %1 = arith.truncf %0 : vector<328x4xf32> to vector<328x4xbf16>
    %c327_i32 = arith.constant 327 : i32
    %2 = tpu.dynamic_rotate %0 by %c327_i32 dim 0 : vector<328x4xf32>, i32 -> vector<328x4xf32>
    %3 = arith.truncf %2 : vector<328x4xf32> to vector<328x4xbf16>
    %c326_i32 = arith.constant 326 : i32
    %4 = tpu.dynamic_rotate %0 by %c326_i32 dim 0 : vector<328x4xf32>, i32 -> vector<328x4xf32>
    %5 = arith.truncf %4 : vector<328x4xf32> to vector<328x4xbf16>
    %6 = tpu.concatenate %1, %3, %5 in 1 : vector<328x4xbf16>, vector<328x4xbf16>, vector<328x4xbf16> -> vector<328x12xbf16>
    %c0_1 = arith.constant 0 : index
    %c0_2 = arith.constant 0 : index
    %c0_3 = arith.constant 0 : index
    %7 = vector.load %arg2[%c0_1, %c0_2, %c0_3] : memref<3x12x32xbf16, #tpu.memory_space<vmem>>, vector<1x12x32xbf16>
    %8 = vector.shape_cast %7 : vector<1x12x32xbf16> to vector<12x32xbf16>
    %cst = arith.constant dense<0.000000e+00> : vector<328x32xf32>
    %9 = tpu.matmul %6, %8, %cst {dimension_numbers = #tpu.dot_dimension_numbers<[1], [0], [0], [1], [0, 0, 1, 1], [], []>} : vector<328x12xbf16>, vector<12x32xbf16>, vector<328x32xf32> -> vector<328x32xf32>
    %c310_i32 = arith.constant 310 : i32
    %10 = tpu.dynamic_rotate %0 by %c310_i32 dim 0 : vector<328x4xf32>, i32 -> vector<328x4xf32>
    %11 = arith.truncf %10 : vector<328x4xf32> to vector<328x4xbf16>
    %c309_i32 = arith.constant 309 : i32
    %12 = tpu.dynamic_rotate %0 by %c309_i32 dim 0 : vector<328x4xf32>, i32 -> vector<328x4xf32>
    %13 = arith.truncf %12 : vector<328x4xf32> to vector<328x4xbf16>
    %c308_i32 = arith.constant 308 : i32
    %14 = tpu.dynamic_rotate %0 by %c308_i32 dim 0 : vector<328x4xf32>, i32 -> vector<328x4xf32>
    %15 = arith.truncf %14 : vector<328x4xf32> to vector<328x4xbf16>
    %16 = tpu.concatenate %11, %13, %15 in 1 : vector<328x4xbf16>, vector<328x4xbf16>, vector<328x4xbf16> -> vector<328x12xbf16>
    %c1 = arith.constant 1 : index
    %c0_4 = arith.constant 0 : index
    %c0_5 = arith.constant 0 : index
    %17 = vector.load %arg2[%c1, %c0_4, %c0_5] : memref<3x12x32xbf16, #tpu.memory_space<vmem>>, vector<1x12x32xbf16>
    %18 = vector.shape_cast %17 : vector<1x12x32xbf16> to vector<12x32xbf16>
    %cst_6 = arith.constant dense<0.000000e+00> : vector<328x32xf32>
    %19 = tpu.matmul %16, %18, %cst_6 {dimension_numbers = #tpu.dot_dimension_numbers<[1], [0], [0], [1], [0, 0, 1, 1], [], []>} : vector<328x12xbf16>, vector<12x32xbf16>, vector<328x32xf32> -> vector<328x32xf32>
    %20 = arith.addf %9, %19 : vector<328x32xf32>
    %c292_i32 = arith.constant 292 : i32
    %21 = tpu.dynamic_rotate %0 by %c292_i32 dim 0 : vector<328x4xf32>, i32 -> vector<328x4xf32>
    %22 = arith.truncf %21 : vector<328x4xf32> to vector<328x4xbf16>
    %c291_i32 = arith.constant 291 : i32
    %23 = tpu.dynamic_rotate %0 by %c291_i32 dim 0 : vector<328x4xf32>, i32 -> vector<328x4xf32>
    %24 = arith.truncf %23 : vector<328x4xf32> to vector<328x4xbf16>
    %c290_i32 = arith.constant 290 : i32
    %25 = tpu.dynamic_rotate %0 by %c290_i32 dim 0 : vector<328x4xf32>, i32 -> vector<328x4xf32>
    %26 = arith.truncf %25 : vector<328x4xf32> to vector<328x4xbf16>
    %27 = tpu.concatenate %22, %24, %26 in 1 : vector<328x4xbf16>, vector<328x4xbf16>, vector<328x4xbf16> -> vector<328x12xbf16>
    %c2 = arith.constant 2 : index
    %c0_7 = arith.constant 0 : index
    %c0_8 = arith.constant 0 : index
    %28 = vector.load %arg2[%c2, %c0_7, %c0_8] : memref<3x12x32xbf16, #tpu.memory_space<vmem>>, vector<1x12x32xbf16>
    %29 = vector.shape_cast %28 : vector<1x12x32xbf16> to vector<12x32xbf16>
    %cst_9 = arith.constant dense<0.000000e+00> : vector<328x32xf32>
    %30 = tpu.matmul %27, %29, %cst_9 {dimension_numbers = #tpu.dot_dimension_numbers<[1], [0], [0], [1], [0, 0, 1, 1], [], []>} : vector<328x12xbf16>, vector<12x32xbf16>, vector<328x32xf32> -> vector<328x32xf32>
    %31 = arith.addf %20, %30 : vector<328x32xf32>
    %c0_10 = arith.constant 0 : index
    %c0_11 = arith.constant 0 : index
    %32 = vector.load %arg3[%c0_10, %c0_11] : memref<1x32xf32, #tpu.memory_space<vmem>>, vector<1x32xf32>
    %33 = vector.broadcast %32 : vector<1x32xf32> to vector<328x32xf32>
    %34 = arith.addf %31, %33 : vector<328x32xf32>
    %cst_12 = arith.constant 0.000000e+00 : f32
    %35 = vector.broadcast %cst_12 : f32 to vector<328x32xf32>
    %36 = arith.maximumf %34, %35 : vector<328x32xf32>
    %37 = arith.truncf %36 : vector<328x32xf32> to vector<328x32xbf16>
    %c0_13 = arith.constant 0 : index
    %c0_14 = arith.constant 0 : index
    %38 = vector.load %arg4[%c0_13, %c0_14] : memref<32x128xbf16, #tpu.memory_space<vmem>>, vector<32x128xbf16>
    %cst_15 = arith.constant dense<0.000000e+00> : vector<328x128xf32>
    %39 = tpu.matmul %37, %38, %cst_15 {dimension_numbers = #tpu.dot_dimension_numbers<[1], [0], [0], [1], [0, 0, 1, 1], [], []>} : vector<328x32xbf16>, vector<32x128xbf16>, vector<328x128xf32> -> vector<328x128xf32>
    %c0_16 = arith.constant 0 : index
    %c0_17 = arith.constant 0 : index
    %40 = vector.load %arg5[%c0_16, %c0_17] : memref<1x128xf32, #tpu.memory_space<vmem>>, vector<1x128xf32>
    %41 = vector.broadcast %40 : vector<1x128xf32> to vector<328x128xf32>
    %42 = arith.addf %39, %41 : vector<328x128xf32>
    %c0_18 = arith.constant 0 : index
    %c0_19 = arith.constant 0 : index
    %43 = vector.load %arg6[%c0_18, %c0_19] : memref<328x128xf32, #tpu.memory_space<vmem>>, vector<328x128xf32>
    tpu.vector_store %arg6[%c0_18, %c0_19], %42 {strides = array<i32>} : memref<328x128xf32, #tpu.memory_space<vmem>>, vector<328x128xf32>,
    return
  }
  func.func @transform_0(%arg0: i32) -> (i32, i32) {
    %c0_i32 = arith.constant 0 : i32
    %c0_i32_0 = arith.constant 0 : i32
    return %arg0, %c0_i32 : i32, i32
  }
  func.func @transform_1(%arg0: i32) -> (i32, i32, i32) {
    %c0_i32 = arith.constant 0 : i32
    %c0_i32_0 = arith.constant 0 : i32
    %c0_i32_1 = arith.constant 0 : i32
    %c0_i32_2 = arith.constant 0 : i32
    return %c0_i32, %c0_i32_0, %c0_i32_1 : i32, i32, i32
  }
  func.func @transform_2(%arg0: i32) -> (i32, i32) {
    %c0_i32 = arith.constant 0 : i32
    %c0_i32_0 = arith.constant 0 : i32
    %c0_i32_1 = arith.constant 0 : i32
    return %c0_i32, %c0_i32_0 : i32, i32
  }
  func.func @transform_3(%arg0: i32) -> (i32, i32) {
    %c0_i32 = arith.constant 0 : i32
    %c0_i32_0 = arith.constant 0 : i32
    %c0_i32_1 = arith.constant 0 : i32
    return %c0_i32, %c0_i32_0 : i32, i32
  }
  func.func @transform_4(%arg0: i32) -> (i32, i32) {
    %c0_i32 = arith.constant 0 : i32
    %c0_i32_0 = arith.constant 0 : i32
    %c0_i32_1 = arith.constant 0 : i32
    return %c0_i32, %c0_i32_0 : i32, i32
  }
  func.func @transform_5(%arg0: i32) -> (i32, i32) {
    %c0_i32 = arith.constant 0 : i32
    %c0_i32_0 = arith.constant 0 : i32
    return %arg0, %c0_i32 : i32, i32
  }
}

</mosaic_0001>

<llo_original>
// kernel: tpu_custom_call.1
$region0: #{tpu_custom_call.1}
  #allocation0 [shape = 'u32[]', space=smem, size = 0x4, offset = 0x4, fixed_abs, tag = 'smem constant byte address 0x4 - core index']
  #allocation1 [shape = 'u32[144,128]{1,0:T(1,128)}', space=vmem, size = 0x12000, scoped, tag = 'internal scratch']
  %s0 = inlined_call_operand.vmem [shape: f32[656,4], index: 0, kind: input, shape index: {}]
  %s1 = inlined_call_operand.vmem [shape: bf16[3,12,32], index: 1, kind: input, shape index: {}]
  %s2 = inlined_call_operand.vmem [shape: f32[1,32], index: 2, kind: input, shape index: {}]
  %s3 = inlined_call_operand.vmem [shape: bf16[32,128], index: 3, kind: input, shape index: {}]
  %s4 = inlined_call_operand.vmem [shape: f32[1,128], index: 4, kind: input, shape index: {}]
  %s5 = inlined_call_operand.hbm [shape: f32[656,128], index: 5, kind: output, shape index: {}]
  %s6 = sld [smem:[#allocation0]]
  $region53: #{tpu_custom_call.1} parent=0
    _
  %s8 = ssub.s32 1, %s6
  %s9 = scalar_select 0, %s8, %s6
  $region1: #{tpu_custom_call.1} parent=0
    #allocation2 [shape = 'u8[335872]{0}', space=vmem, size = 0x52000, scoped, tag = 'output window, operand 0']
    #allocation3 [shape = 's32[2]{0}', space=sflag, size = 0x8, scoped, tag = 'scoped memory for tpu_custom_call.1']
    %10 = vsyncpa [#allocation3], 0
    %s11 = scalar_lea.sflag [#allocation3], 1
    %12 = vsyncpa %s11, 0
    loop: start=0, step=1, limit=4
    $region2: #{tpu_custom_call.1} parent=1 // loop_pre_header
      _
    $region3: #{tpu_custom_call.1} parent=1 // loop_header
      %s14 = sphi 0, %s18
      %p15 = scmp.ge.s32.totalorder %s14, 4
      %s24 = sphi 0, %s26
      %s27 = sphi 0, %s24
      %s28 = sphi 0, %s27
      %s44 = sphi 0, %s28
      %s48 = sphi 0, %s48
      %s50 = sphi 0, %s48
      %s51 = sphi 0, %s50
      %s65 = sphi 0, %s51
      %s69 = sphi 0, %s69
      %s71 = sphi 0, %s69
      %s72 = sphi 0, %s71
      %s86 = sphi 0, %s72
      %s90 = sphi 0, %s90
      %s92 = sphi 0, %s90
      %s93 = sphi 0, %s92
      %s107 = sphi 0, %s93
      %s111 = sphi 0, %s111
      %s113 = sphi 0, %s111
      %s114 = sphi 0, %s113
      %s128 = sphi 0, %s114
      %s134 = sphi 0, %s136
      %s137 = sphi 0, %s134
      %s138 = sphi 0, %s137
      %s154 = sphi 0, %s138
    $region4: #{tpu_custom_call.1} parent=1 // loop_header_branch
      %17 = sbr.rel (%p15) target = $region8
    $region5: #{tpu_custom_call.1} parent=1 // loop_body
      %s19 = ssub.s32 %s14, 1
      %s20 = ssub.s32 %s14, 2
      %s21 = sadd.s32 %s14, 1
      %s22 = ssub.s32 %s14, %s21
      %p23 = scmp.eq.s32.totalorder %s22, 0
      %s25 = sadd.s32 %s24, 1
      %s26 = scalar_select %p23, %s24, %s25
      %p29 = pneg %p23
      %p30 = scmp.eq.s32.totalorder %s14, 1
      %p31 = por %p29, %p30
      %p32 = scmp.ne.s32.totalorder %s24, %s27
      %p33 = scmp.eq.s32.totalorder %s14, 0
      %p34 = por %p32, %p33
      %p35 = scmp.ne.s32.totalorder %s24, %s27
      %p36 = scmp.eq.s32.totalorder %s19, 1
      %p37 = por %p35, %p36
      %p38 = scmp.ne.s32.totalorder %s27, %s28
      %p39 = scmp.eq.s32.totalorder %s19, 0
      %p40 = por %p38, %p39
      %p41 = scmp.ne.s32.totalorder %s27, %s28
      %p42 = scmp.eq.s32.totalorder %s20, 1
      %p43 = por %p41, %p42
      %p45 = scmp.ne.s32.totalorder %s28, %s44
      %p46 = scmp.eq.s32.totalorder %s20, 0
      %p47 = por %p45, %p46
      %s49 = sadd.s32 %s48, 1
      %p52 = scmp.eq.s32.totalorder %s14, 1
      %p53 = scmp.ne.s32.totalorder %s48, %s50
      %p54 = scmp.eq.s32.totalorder %s14, 0
      %p55 = por %p53, %p54
      %p56 = scmp.ne.s32.totalorder %s48, %s50
      %p57 = scmp.eq.s32.totalorder %s19, 1
      %p58 = por %p56, %p57
      %p59 = scmp.ne.s32.totalorder %s50, %s51
      %p60 = scmp.eq.s32.totalorder %s19, 0
      %p61 = por %p59, %p60
      %p62 = scmp.ne.s32.totalorder %s50, %s51
      %p63 = scmp.eq.s32.totalorder %s20, 1
      %p64 = por %p62, %p63
      %p66 = scmp.ne.s32.totalorder %s51, %s65
      %p67 = scmp.eq.s32.totalorder %s20, 0
      %p68 = por %p66, %p67
      %s70 = sadd.s32 %s69, 1
      %p73 = scmp.eq.s32.totalorder %s14, 1
      %p74 = scmp.ne.s32.totalorder %s69, %s71
      %p75 = scmp.eq.s32.totalorder %s14, 0
      %p76 = por %p74, %p75
      %p77 = scmp.ne.s32.totalorder %s69, %s71
      %p78 = scmp.eq.s32.totalorder %s19, 1
      %p79 = por %p77, %p78
      %p80 = scmp.ne.s32.totalorder %s71, %s72
      %p81 = scmp.eq.s32.totalorder %s19, 0
      %p82 = por %p80, %p81
      %p83 = scmp.ne.s32.totalorder %s71, %s72
      %p84 = scmp.eq.s32.totalorder %s20, 1
      %p85 = por %p83, %p84
      %p87 = scmp.ne.s32.totalorder %s72, %s86
      %p88 = scmp.eq.s32.totalorder %s20, 0
      %p89 = por %p87, %p88
      %s91 = sadd.s32 %s90, 1
      %p94 = scmp.eq.s32.totalorder %s14, 1
      %p95 = scmp.ne.s32.totalorder %s90, %s92
      %p96 = scmp.eq.s32.totalorder %s14, 0
      %p97 = por %p95, %p96
      %p98 = scmp.ne.s32.totalorder %s90, %s92
      %p99 = scmp.eq.s32.totalorder %s19, 1
      %p100 = por %p98, %p99
      %p101 = scmp.ne.s32.totalorder %s92, %s93
      %p102 = scmp.eq.s32.totalorder %s19, 0
      %p103 = por %p101, %p102
      %p104 = scmp.ne.s32.totalorder %s92, %s93
      %p105 = scmp.eq.s32.totalorder %s20, 1
      %p106 = por %p104, %p105
      %p108 = scmp.ne.s32.totalorder %s93, %s107
      %p109 = scmp.eq.s32.totalorder %s20, 0
      %p110 = por %p108, %p109
      %s112 = sadd.s32 %s111, 1
      %p115 = scmp.eq.s32.totalorder %s14, 1
      %p116 = scmp.ne.s32.totalorder %s111, %s113
      %p117 = scmp.eq.s32.totalorder %s14, 0
      %p118 = por %p116, %p117
      %p119 = scmp.ne.s32.totalorder %s111, %s113
      %p120 = scmp.eq.s32.totalorder %s19, 1
      %p121 = por %p119, %p120
      %p122 = scmp.ne.s32.totalorder %s113, %s114
      %p123 = scmp.eq.s32.totalorder %s19, 0
      %p124 = por %p122, %p123
      %p125 = scmp.ne.s32.totalorder %s113, %s114
      %p126 = scmp.eq.s32.totalorder %s20, 1
      %p127 = por %p125, %p126
      %p129 = scmp.ne.s32.totalorder %s114, %s128
      %p130 = scmp.eq.s32.totalorder %s20, 0
      %p131 = por %p129, %p130
      %s132 = ssub.s32 %s14, %s21
      %p133 = scmp.eq.s32.totalorder %s132, 0
      %s135 = sadd.s32 %s134, 1
      %s136 = scalar_select %p133, %s134, %s135
      %p139 = pneg %p133
      %p140 = scmp.eq.s32.totalorder %s14, 1
      %p141 = por %p139, %p140
      %p142 = scmp.ne.s32.totalorder %s134, %s137
      %p143 = scmp.eq.s32.totalorder %s14, 0
      %p144 = por %p142, %p143
      %p145 = scmp.ne.s32.totalorder %s134, %s137
      %p146 = scmp.eq.s32.totalorder %s19, 1
      %p147 = por %p145, %p146
      %p148 = scmp.ne.s32.totalorder %s137, %s138
      %p149 = scmp.eq.s32.totalorder %s19, 0
      %p150 = por %p148, %p149
      %p151 = scmp.ne.s32.totalorder %s137, %s138
      %p152 = scmp.eq.s32.totalorder %s20, 1
      %p153 = por %p151, %p152
      %p155 = scmp.ne.s32.totalorder %s138, %s154
      %p156 = scmp.eq.s32.totalorder %s20, 0
      %p157 = por %p155, %p156
      %p158 = scmp.le.s32.totalorder 1, %s14
      %p159 = scmp.lt.s32.totalorder %s14, 3
      %p160 = pnand %p158, %p159
      %p161 = pneg %p160
      // Predicated region
      $region9: #{tpu_custom_call.1} parent=5 // pred_check
        _
      $region10: #{tpu_custom_call.1} parent=5 // pred_check_branch
        %163 = sbr.rel (%p160) target = $region12
      $region11: #{tpu_custom_call.1} parent=5 // pred_region
        %s164 = ssub.s32 %s14, 1
        // Predicated region
        $region13: #{tpu_custom_call.1} parent=11 // pred_check
          %p165 = pneg %p61
        $region14: #{tpu_custom_call.1} parent=11 // pred_check_branch
          %167 = sbr.rel (%p165) target = $region16
        $region15: #{tpu_custom_call.1} parent=11 // pred_region
          _
        $region16: #{tpu_custom_call.1} parent=11 // pred_fallthru
          _
        // Predicated region
        $region17: #{tpu_custom_call.1} parent=11 // pred_check
          %p168 = pneg %p82
        $region18: #{tpu_custom_call.1} parent=11 // pred_check_branch
          %170 = sbr.rel (%p168) target = $region20
        $region19: #{tpu_custom_call.1} parent=11 // pred_region
          _
        $region20: #{tpu_custom_call.1} parent=11 // pred_fallthru
          _
        // Predicated region
        $region21: #{tpu_custom_call.1} parent=11 // pred_check
          %p171 = pneg %p103
        $region22: #{tpu_custom_call.1} parent=11 // pred_check_branch
          %173 = sbr.rel (%p171) target = $region24
        $region23: #{tpu_custom_call.1} parent=11 // pred_region
          _
        $region24: #{tpu_custom_call.1} parent=11 // pred_fallthru
          _
        // Predicated region
        $region25: #{tpu_custom_call.1} parent=11 // pred_check
          %p174 = pneg %p124
        $region26: #{tpu_custom_call.1} parent=11 // pred_check_branch
          %176 = sbr.rel (%p174) target = $region28
        $region27: #{tpu_custom_call.1} parent=11 // pred_region
          _
        $region28: #{tpu_custom_call.1} parent=11 // pred_fallthru
          _
      $region12: #{tpu_custom_call.1} parent=5 // pred_fallthru
        _
      %p177 = scmp.lt.s32.totalorder %s14, 2
      // Predicated region
      $region29: #{tpu_custom_call.1} parent=5 // pred_check
        %p178 = pneg %p177
      $region30: #{tpu_custom_call.1} parent=5 // pred_check_branch
        %180 = sbr.rel (%p178) target = $region32
      $region31: #{tpu_custom_call.1} parent=5 // pred_region
        // Predicated region
        $region33: #{tpu_custom_call.1} parent=31 // pred_check
          %p181 = pneg %p34
        $region34: #{tpu_custom_call.1} parent=31 // pred_check_branch
          %183 = sbr.rel (%p181) target = $region36
        $region35: #{tpu_custom_call.1} parent=31 // pred_region
          %s184 = smul.u32 41, %s14
          %p185 = scmp.lt.s32.totalorder %s184, 81
          %s186 = scalar_select %p185, %s184, 81
          %s187 = smul.addr %s186, 8
          %s188 = scalar_lea.vmem %s0, %s187
          %s189 = smul.u32 41, %s14
        $region36: #{tpu_custom_call.1} parent=31 // pred_fallthru
          _
      $region32: #{tpu_custom_call.1} parent=5 // pred_fallthru
        _
      %p190 = scmp.le.s32.totalorder 1, %s14
      %p191 = scmp.lt.s32.totalorder %s14, 3
      %p192 = pnand %p190, %p191
      %p193 = pneg %p192
      // Predicated region
      $region37: #{tpu_custom_call.1} parent=5 // pred_check
        _
      $region38: #{tpu_custom_call.1} parent=5 // pred_check_branch
        %195 = sbr.rel (%p192) target = $region40
      $region39: #{tpu_custom_call.1} parent=5 // pred_region
        %s196 = ssub.s32 %s14, 1
        %s197 = smul.u32 41, %s19
        %p198 = scmp.lt.s32.totalorder %s197, 81
        %s199 = scalar_select %p198, %s197, 81
        %s200 = smul.addr %s199, 8
        %s201 = scalar_lea.vmem %s0, %s200
        %p202 = pneg %p40
        %p203 = pneg %p37
        %p204 = pneg %p61
        %p205 = pneg %p58
        %p206 = pneg %p82
        %p207 = pneg %p79
        %p208 = pneg %p103
        %p209 = pneg %p100
        %p210 = pneg %p124
        %p211 = pneg %p121
        %p212 = pneg %p150
        %p213 = pneg %p147
        %s214 = sand.u32 %s137, 1
        %s215 = scalar_lea.sflag [#allocation3], %s214
        %s216 = sand.u32 %s137, 1
        %s217 = smul.addr %s216, 328
        %s218 = scalar_lea.vmem [#allocation2], %s217
        %s219 = smul.u32 41, %s19
        %p220 = scmp.lt.s32.totalorder %s219, 81
        %s221 = scalar_select %p220, %s219, 81
        %s222 = smul.addr %s221, 8
        %s223 = scalar_lea.vmem %s0, %s222
        %s224 = smul.u32 41, %s19
        %s225 = smul.u32 41, %s19
        %v227 = vld [vmem:[%s223] sm:$0xff]
        %v228 = vld [vmem:[%s223 + $0x8] sm:$0xff]
        %v229 = vld [vmem:[%s223 + $0x10] sm:$0xff]
        %v230 = vld [vmem:[%s223 + $0x18] sm:$0xff]
        %v231 = vld [vmem:[%s223 + $0x20] sm:$0xff]
        %v232 = vld [vmem:[%s223 + $0x28] sm:$0xff]
        %v233 = vld [vmem:[%s223 + $0x30] sm:$0xff]
        %v234 = vld [vmem:[%s223 + $0x38] sm:$0xff]
        %v235 = vld [vmem:[%s223 + $0x40] sm:$0xff]
        %v236 = vld [vmem:[%s223 + $0x48] sm:$0xff]
        %v237 = vld [vmem:[%s223 + $0x50] sm:$0xff]
        %v238 = vld [vmem:[%s223 + $0x58] sm:$0xff]
        %v239 = vld [vmem:[%s223 + $0x60] sm:$0xff]
        %v240 = vld [vmem:[%s223 + $0x68] sm:$0xff]
        %v241 = vld [vmem:[%s223 + $0x70] sm:$0xff]
        %v242 = vld [vmem:[%s223 + $0x78] sm:$0xff]
        %v243 = vld [vmem:[%s223 + $0x80] sm:$0xff]
        %v244 = vld [vmem:[%s223 + $0x88] sm:$0xff]
        %v245 = vld [vmem:[%s223 + $0x90] sm:$0xff]
        %v246 = vld [vmem:[%s223 + $0x98] sm:$0xff]
        %v247 = vld [vmem:[%s223 + $0xa0] sm:$0xff]
        %v248 = vld [vmem:[%s223 + $0xa8] sm:$0xff]
        %v249 = vld [vmem:[%s223 + $0xb0] sm:$0xff]
        %v250 = vld [vmem:[%s223 + $0xb8] sm:$0xff]
        %v251 = vld [vmem:[%s223 + $0xc0] sm:$0xff]
        %v252 = vld [vmem:[%s223 + $0xc8] sm:$0xff]
        %v253 = vld [vmem:[%s223 + $0xd0] sm:$0xff]
        %v254 = vld [vmem:[%s223 + $0xd8] sm:$0xff]
        %v255 = vld [vmem:[%s223 + $0xe0] sm:$0xff]
        %v256 = vld [vmem:[%s223 + $0xe8] sm:$0xff]
        %v257 = vld [vmem:[%s223 + $0xf0] sm:$0xff]
        %v258 = vld [vmem:[%s223 + $0xf8] sm:$0xff]
        %v259 = vld [vmem:[%s223 + $0x100] sm:$0xff]
        %v260 = vld [vmem:[%s223 + $0x108] sm:$0xff]
        %v261 = vld [vmem:[%s223 + $0x110] sm:$0xff]
        %v262 = vld [vmem:[%s223 + $0x118] sm:$0xff]
        %v263 = vld [vmem:[%s223 + $0x120] sm:$0xff]
        %v264 = vld [vmem:[%s223 + $0x128] sm:$0xff]
        %v265 = vld [vmem:[%s223 + $0x130] sm:$0xff]
        %v266 = vld [vmem:[%s223 + $0x138] sm:$0xff]
        %v267 = vld [vmem:[%s223 + $0x140] sm:$0xff]
        %v268 = vpack.c.bf16 %v228, %v227
        %v269 = vpack.c.bf16 %v230, %v229
        %v270 = vpack.c.bf16 %v232, %v231
        %v271 = vpack.c.bf16 %v234, %v233
        %v272 = vpack.c.bf16 %v236, %v235
        %v273 = vpack.c.bf16 %v238, %v237
        %v274 = vpack.c.bf16 %v240, %v239
        %v275 = vpack.c.bf16 %v242, %v241
        %v276 = vpack.c.bf16 %v244, %v243
        %v277 = vpack.c.bf16 %v246, %v245
        %v278 = vpack.c.bf16 %v248, %v247
        %v279 = vpack.c.bf16 %v250, %v249
        %v280 = vpack.c.bf16 %v252, %v251
        %v281 = vpack.c.bf16 %v254, %v253
        %v282 = vpack.c.bf16 %v256, %v255
        %v283 = vpack.c.bf16 %v258, %v257
        %v284 = vpack.c.bf16 %v260, %v259
        %v285 = vpack.c.bf16 %v262, %v261
        %v286 = vpack.c.bf16 %v264, %v263
        %v287 = vpack.c.bf16 %v266, %v265
        %v288 = vpack.c.bf16 %v267, %v267
        %v289 = vrot.slane %v227, 1
        %v290 = vrot.slane %v228, 1
        %v291 = vrot.slane %v229, 1
        %v292 = vrot.slane %v230, 1
        %v293 = vrot.slane %v231, 1
        %v294 = vrot.slane %v232, 1
        %v295 = vrot.slane %v233, 1
        %v296 = vrot.slane %v234, 1
        %v297 = vrot.slane %v235, 1
        %v298 = vrot.slane %v236, 1
        %v299 = vrot.slane %v237, 1
        %v300 = vrot.slane %v238, 1
        %v301 = vrot.slane %v239, 1
        %v302 = vrot.slane %v240, 1
        %v303 = vrot.slane %v241, 1
        %v304 = vrot.slane %v242, 1
        %v305 = vrot.slane %v243, 1
        %v306 = vrot.slane %v244, 1
        %v307 = vrot.slane %v245, 1
        %v308 = vrot.slane %v246, 1
        %v309 = vrot.slane %v247, 1
        %v310 = vrot.slane %v248, 1
        %v311 = vrot.slane %v249, 1
        %v312 = vrot.slane %v250, 1
        %v313 = vrot.slane %v251, 1
        %v314 = vrot.slane %v252, 1
        %v315 = vrot.slane %v253, 1
        %v316 = vrot.slane %v254, 1
        %v317 = vrot.slane %v255, 1
        %v318 = vrot.slane %v256, 1
        %v319 = vrot.slane %v257, 1
        %v320 = vrot.slane %v258, 1
        %v321 = vrot.slane %v259, 1
        %v322 = vrot.slane %v260, 1
        %v323 = vrot.slane %v261, 1
        %v324 = vrot.slane %v262, 1
        %v325 = vrot.slane %v263, 1
        %v326 = vrot.slane %v264, 1
        %v327 = vrot.slane %v265, 1
        %v328 = vrot.slane %v266, 1
        %v329 = vrot.slane %v267, 1
        %v330 = vlaneseq
        %v331 = vshrl.u32 %v330, 7
        %vm332 = vcmp.lt.s32.totalorder %v331, 7
        %v333 = vsel %vm332, %v328, %v329
        %v334 = vsel %vm332, %v327, %v328
        %v335 = vsel %vm332, %v326, %v327
        %v336 = vsel %vm332, %v325, %v326
        %v337 = vsel %vm332, %v324, %v325
        %v338 = vsel %vm332, %v323, %v324
        %v339 = vsel %vm332, %v322, %v323
        %v340 = vsel %vm332, %v321, %v322
        %v341 = vsel %vm332, %v320, %v321
        %v342 = vsel %vm332, %v319, %v320
        %v343 = vsel %vm332, %v318, %v319
        %v344 = vsel %vm332, %v317, %v318
        %v345 = vsel %vm332, %v316, %v317
        %v346 = vsel %vm332, %v315, %v316
        %v347 = vsel %vm332, %v314, %v315
        %v348 = vsel %vm332, %v313, %v314
        %v349 = vsel %vm332, %v312, %v313
        %v350 = vsel %vm332, %v311, %v312
        %v351 = vsel %vm332, %v310, %v311
        %v352 = vsel %vm332, %v309, %v310
        %v353 = vsel %vm332, %v308, %v309
        %v354 = vsel %vm332, %v307, %v308
        %v355 = vsel %vm332, %v306, %v307
        %v356 = vsel %vm332, %v305, %v306
        %v357 = vsel %vm332, %v304, %v305
        %v358 = vsel %vm332, %v303, %v304
        %v359 = vsel %vm332, %v302, %v303
        %v360 = vsel %vm332, %v301, %v302
        %v361 = vsel %vm332, %v300, %v301
        %v362 = vsel %vm332, %v299, %v300
        %v363 = vsel %vm332, %v298, %v299
        %v364 = vsel %vm332, %v297, %v298
        %v365 = vsel %vm332, %v296, %v297
        %v366 = vsel %vm332, %v295, %v296
        %v367 = vsel %vm332, %v294, %v295
        %v368 = vsel %vm332, %v293, %v294
        %v369 = vsel %vm332, %v292, %v293
        %v370 = vsel %vm332, %v291, %v292
        %v371 = vsel %vm332, %v290, %v291
        %v372 = vsel %vm332, %v289, %v290
        %v373 = vsel %vm332, %v329, %v289
        %v374 = vpack.c.bf16 %v371, %v372
        %v375 = vpack.c.bf16 %v369, %v370
        %v376 = vpack.c.bf16 %v367, %v368
        %v377 = vpack.c.bf16 %v365, %v366
        %v378 = vpack.c.bf16 %v363, %v364
        %v379 = vpack.c.bf16 %v361, %v362
        %v380 = vpack.c.bf16 %v359, %v360
        %v381 = vpack.c.bf16 %v357, %v358
        %v382 = vpack.c.bf16 %v355, %v356
        %v383 = vpack.c.bf16 %v353, %v354
        %v384 = vpack.c.bf16 %v351, %v352
        %v385 = vpack.c.bf16 %v349, %v350
        %v386 = vpack.c.bf16 %v347, %v348
        %v387 = vpack.c.bf16 %v345, %v346
        %v388 = vpack.c.bf16 %v343, %v344
        %v389 = vpack.c.bf16 %v341, %v342
        %v390 = vpack.c.bf16 %v339, %v340
        %v391 = vpack.c.bf16 %v337, %v338
        %v392 = vpack.c.bf16 %v335, %v336
        %v393 = vpack.c.bf16 %v333, %v334
        %v394 = vpack.c.bf16 %v373, %v373
        %v395 = vrot.slane %v227, 2
        %v396 = vrot.slane %v228, 2
        %v397 = vrot.slane %v229, 2
        %v398 = vrot.slane %v230, 2
        %v399 = vrot.slane %v231, 2
        %v400 = vrot.slane %v232, 2
        %v401 = vrot.slane %v233, 2
        %v402 = vrot.slane %v234, 2
        %v403 = vrot.slane %v235, 2
        %v404 = vrot.slane %v236, 2
        %v405 = vrot.slane %v237, 2
        %v406 = vrot.slane %v238, 2
        %v407 = vrot.slane %v239, 2
        %v408 = vrot.slane %v240, 2
        %v409 = vrot.slane %v241, 2
        %v410 = vrot.slane %v242, 2
        %v411 = vrot.slane %v243, 2
        %v412 = vrot.slane %v244, 2
        %v413 = vrot.slane %v245, 2
        %v414 = vrot.slane %v246, 2
        %v415 = vrot.slane %v247, 2
        %v416 = vrot.slane %v248, 2
        %v417 = vrot.slane %v249, 2
        %v418 = vrot.slane %v250, 2
        %v419 = vrot.slane %v251, 2
        %v420 = vrot.slane %v252, 2
        %v421 = vrot.slane %v253, 2
        %v422 = vrot.slane %v254, 2
        %v423 = vrot.slane %v255, 2
        %v424 = vrot.slane %v256, 2
        %v425 = vrot.slane %v257, 2
        %v426 = vrot.slane %v258, 2
        %v427 = vrot.slane %v259, 2
        %v428 = vrot.slane %v260, 2
        %v429 = vrot.slane %v261, 2
        %v430 = vrot.slane %v262, 2
        %v431 = vrot.slane %v263, 2
        %v432 = vrot.slane %v264, 2
        %v433 = vrot.slane %v265, 2
        %v434 = vrot.slane %v266, 2
        %v435 = vrot.slane %v267, 2
        %vm436 = vcmp.lt.s32.totalorder %v331, 6
        %v437 = vsel %vm436, %v434, %v435
        %v438 = vsel %vm436, %v433, %v434
        %v439 = vsel %vm436, %v432, %v433
        %v440 = vsel %vm436, %v431, %v432
        %v441 = vsel %vm436, %v430, %v431
        %v442 = vsel %vm436, %v429, %v430
        %v443 = vsel %vm436, %v428, %v429
        %v444 = vsel %vm436, %v427, %v428
        %v445 = vsel %vm436, %v426, %v427
        %v446 = vsel %vm436, %v425, %v426
        %v447 = vsel %vm436, %v424, %v425
        %v448 = vsel %vm436, %v423, %v424
        %v449 = vsel %vm436, %v422, %v423
        %v450 = vsel %vm436, %v421, %v422
        %v451 = vsel %vm436, %v420, %v421
        %v452 = vsel %vm436, %v419, %v420
        %v453 = vsel %vm436, %v418, %v419
        %v454 = vsel %vm436, %v417, %v418
        %v455 = vsel %vm436, %v416, %v417
        %v456 = vsel %vm436, %v415, %v416
        %v457 = vsel %vm436, %v414, %v415
        %v458 = vsel %vm436, %v413, %v414
        %v459 = vsel %vm436, %v412, %v413
        %v460 = vsel %vm436, %v411, %v412
        %v461 = vsel %vm436, %v410, %v411
        %v462 = vsel %vm436, %v409, %v410
        %v463 = vsel %vm436, %v408, %v409
        %v464 = vsel %vm436, %v407, %v408
        %v465 = vsel %vm436, %v406, %v407
        %v466 = vsel %vm436, %v405, %v406
        %v467 = vsel %vm436, %v404, %v405
        %v468 = vsel %vm436, %v403, %v404
        %v469 = vsel %vm436, %v402, %v403
        %v470 = vsel %vm436, %v401, %v402
        %v471 = vsel %vm436, %v400, %v401
        %v472 = vsel %vm436, %v399, %v400
        %v473 = vsel %vm436, %v398, %v399
        %v474 = vsel %vm436, %v397, %v398
        %v475 = vsel %vm436, %v396, %v397
        %v476 = vsel %vm436, %v395, %v396
        %v477 = vsel %vm436, %v435, %v395
        %v478 = vpack.c.bf16 %v475, %v476
        %v479 = vpack.c.bf16 %v473, %v474
        %v480 = vpack.c.bf16 %v471, %v472
        %v481 = vpack.c.bf16 %v469, %v470
        %v482 = vpack.c.bf16 %v467, %v468
        %v483 = vpack.c.bf16 %v465, %v466
        %v484 = vpack.c.bf16 %v463, %v464
        %v485 = vpack.c.bf16 %v461, %v462
        %v486 = vpack.c.bf16 %v459, %v460
        %v487 = vpack.c.bf16 %v457, %v458
        %v488 = vpack.c.bf16 %v455, %v456
        %v489 = vpack.c.bf16 %v453, %v454
        %v490 = vpack.c.bf16 %v451, %v452
        %v491 = vpack.c.bf16 %v449, %v450
        %v492 = vpack.c.bf16 %v447, %v448
        %v493 = vpack.c.bf16 %v445, %v446
        %v494 = vpack.c.bf16 %v443, %v444
        %v495 = vpack.c.bf16 %v441, %v442
        %v496 = vpack.c.bf16 %v439, %v440
        %v497 = vpack.c.bf16 %v437, %v438
        %v498 = vpack.c.bf16 %v477, %v477
        %520 = vrot.lane.b32.xlu0 %v374, 4
        %v521 = vpop.permute.xlu0 %520
        %522 = vrot.lane.b32.xlu0 %v375, 4
        %v523 = vpop.permute.xlu0 %522
        %524 = vrot.lane.b32.xlu0 %v376, 4
        %v525 = vpop.permute.xlu0 %524
        %526 = vrot.lane.b32.xlu0 %v377, 4
        %v527 = vpop.permute.xlu0 %526
        %528 = vrot.lane.b32.xlu0 %v378, 4
        %v529 = vpop.permute.xlu0 %528
        %530 = vrot.lane.b32.xlu0 %v379, 4
        %v531 = vpop.permute.xlu0 %530
        %532 = vrot.lane.b32.xlu0 %v380, 4
        %v533 = vpop.permute.xlu0 %532
        %534 = vrot.lane.b32.xlu0 %v381, 4
        %v535 = vpop.permute.xlu0 %534
        %536 = vrot.lane.b32.xlu0 %v382, 4
        %v537 = vpop.permute.xlu0 %536
        %538 = vrot.lane.b32.xlu0 %v383, 4
        %v539 = vpop.permute.xlu0 %538
        %540 = vrot.lane.b32.xlu0 %v384, 4
        %v541 = vpop.permute.xlu0 %540
        %542 = vrot.lane.b32.xlu0 %v385, 4
        %v543 = vpop.permute.xlu0 %542
        %544 = vrot.lane.b32.xlu0 %v386, 4
        %v545 = vpop.permute.xlu0 %544
        %546 = vrot.lane.b32.xlu0 %v387, 4
        %v547 = vpop.permute.xlu0 %546
        %548 = vrot.lane.b32.xlu0 %v388, 4
        %v549 = vpop.permute.xlu0 %548
        %550 = vrot.lane.b32.xlu0 %v389, 4
        %v551 = vpop.permute.xlu0 %550
        %552 = vrot.lane.b32.xlu0 %v390, 4
        %v553 = vpop.permute.xlu0 %552
        %554 = vrot.lane.b32.xlu0 %v391, 4
        %v555 = vpop.permute.xlu0 %554
        %556 = vrot.lane.b32.xlu0 %v392, 4
        %v557 = vpop.permute.xlu0 %556
        %558 = vrot.lane.b32.xlu0 %v393, 4
        %v559 = vpop.permute.xlu0 %558
        %560 = vrot.lane.b32.xlu0 %v394, 4
        %v561 = vpop.permute.xlu0 %560
        %583 = vrot.lane.b32.xlu0 %v478, 8
        %v584 = vpop.permute.xlu0 %583
        %585 = vrot.lane.b32.xlu0 %v479, 8
        %v586 = vpop.permute.xlu0 %585
        %587 = vrot.lane.b32.xlu0 %v480, 8
        %v588 = vpop.permute.xlu0 %587
        %589 = vrot.lane.b32.xlu0 %v481, 8
        %v590 = vpop.permute.xlu0 %589
        %591 = vrot.lane.b32.xlu0 %v482, 8
        %v592 = vpop.permute.xlu0 %591
        %593 = vrot.lane.b32.xlu0 %v483, 8
        %v594 = vpop.permute.xlu0 %593
        %595 = vrot.lane.b32.xlu0 %v484, 8
        %v596 = vpop.permute.xlu0 %595
        %597 = vrot.lane.b32.xlu0 %v485, 8
        %v598 = vpop.permute.xlu0 %597
        %599 = vrot.lane.b32.xlu0 %v486, 8
        %v600 = vpop.permute.xlu0 %599
        %601 = vrot.lane.b32.xlu0 %v487, 8
        %v602 = vpop.permute.xlu0 %601
        %603 = vrot.lane.b32.xlu0 %v488, 8
        %v604 = vpop.permute.xlu0 %603
        %605 = vrot.lane.b32.xlu0 %v489, 8
        %v606 = vpop.permute.xlu0 %605
        %607 = vrot.lane.b32.xlu0 %v490, 8
        %v608 = vpop.permute.xlu0 %607
        %609 = vrot.lane.b32.xlu0 %v491, 8
        %v610 = vpop.permute.xlu0 %609
        %611 = vrot.lane.b32.xlu0 %v492, 8
        %v612 = vpop.permute.xlu0 %611
        %613 = vrot.lane.b32.xlu0 %v493, 8
        %v614 = vpop.permute.xlu0 %613
        %615 = vrot.lane.b32.xlu0 %v494, 8
        %v616 = vpop.permute.xlu0 %615
        %617 = vrot.lane.b32.xlu0 %v495, 8
        %v618 = vpop.permute.xlu0 %617
        %619 = vrot.lane.b32.xlu0 %v496, 8
        %v620 = vpop.permute.xlu0 %619
        %621 = vrot.lane.b32.xlu0 %v497, 8
        %v622 = vpop.permute.xlu0 %621
        %623 = vrot.lane.b32.xlu0 %v498, 8
        %v624 = vpop.permute.xlu0 %623
        %vm625 = vcmask 31744
        %v628 = vsel %vm625, %v268, %v521
        %v631 = vsel %vm625, %v269, %v523
        %v634 = vsel %vm625, %v270, %v525
        %v637 = vsel %vm625, %v271, %v527
        %v640 = vsel %vm625, %v272, %v529
        %v643 = vsel %vm625, %v273, %v531
        %v646 = vsel %vm625, %v274, %v533
        %v649 = vsel %vm625, %v275, %v535
        %v652 = vsel %vm625, %v276, %v537
        %v655 = vsel %vm625, %v277, %v539
        %v658 = vsel %vm625, %v278, %v541
        %v661 = vsel %vm625, %v279, %v543
        %v664 = vsel %vm625, %v280, %v545
        %v667 = vsel %vm625, %v281, %v547
        %v670 = vsel %vm625, %v282, %v549
        %v673 = vsel %vm625, %v283, %v551
        %v676 = vsel %vm625, %v284, %v553
        %v679 = vsel %vm625, %v285, %v555
        %v682 = vsel %vm625, %v286, %v557
        %v685 = vsel %vm625, %v287, %v559
        %v688 = vsel %vm625, %v288, %v561
        %vm689 = vcmask 64512
        %v691 = vsel %vm689, %v628, %v584
        %v693 = vsel %vm689, %v631, %v586
        %v695 = vsel %vm689, %v634, %v588
        %v697 = vsel %vm689, %v637, %v590
        %v699 = vsel %vm689, %v640, %v592
        %v701 = vsel %vm689, %v643, %v594
        %v703 = vsel %vm689, %v646, %v596
        %v705 = vsel %vm689, %v649, %v598
        %v707 = vsel %vm689, %v652, %v600
        %v709 = vsel %vm689, %v655, %v602
        %v711 = vsel %vm689, %v658, %v604
        %v713 = vsel %vm689, %v661, %v606
        %v715 = vsel %vm689, %v664, %v608
        %v717 = vsel %vm689, %v667, %v610
        %v719 = vsel %vm689, %v670, %v612
        %v721 = vsel %vm689, %v673, %v614
        %v723 = vsel %vm689, %v676, %v616
        %v725 = vsel %vm689, %v679, %v618
        %v727 = vsel %vm689, %v682, %v620
        %v729 = vsel %vm689, %v685, %v622
        %v731 = vsel %vm689, %v688, %v624
        %v732 = vld [vmem:[%s1] sm:$0xf]
        %v733 = vld [vmem:[%s1 + $0x4] sm:$0x3]
        %v734 = vpack.c.bf16 %v476, %v477
        %v735 = vpack.c.bf16 %v475, %v475
        %v736 = vrot.slane %v227, 3
        %v737 = vrot.slane %v228, 3
        %v738 = vrot.slane %v229, 3
        %v739 = vrot.slane %v230, 3
        %v740 = vrot.slane %v231, 3
        %v741 = vrot.slane %v232, 3
        %v742 = vrot.slane %v233, 3
        %v743 = vrot.slane %v234, 3
        %v744 = vrot.slane %v235, 3
        %v745 = vrot.slane %v236, 3
        %v746 = vrot.slane %v237, 3
        %v747 = vrot.slane %v238, 3
        %v748 = vrot.slane %v239, 3
        %v749 = vrot.slane %v240, 3
        %v750 = vrot.slane %v241, 3
        %v751 = vrot.slane %v242, 3
        %v752 = vrot.slane %v243, 3
        %v753 = vrot.slane %v244, 3
        %v754 = vrot.slane %v245, 3
        %v755 = vrot.slane %v246, 3
        %v756 = vrot.slane %v247, 3
        %v757 = vrot.slane %v248, 3
        %v758 = vrot.slane %v249, 3
        %v759 = vrot.slane %v250, 3
        %v760 = vrot.slane %v251, 3
        %v761 = vrot.slane %v252, 3
        %v762 = vrot.slane %v253, 3
        %v763 = vrot.slane %v254, 3
        %v764 = vrot.slane %v255, 3
        %v765 = vrot.slane %v256, 3
        %v766 = vrot.slane %v257, 3
        %v767 = vrot.slane %v258, 3
        %v768 = vrot.slane %v259, 3
        %v769 = vrot.slane %v260, 3
        %v770 = vrot.slane %v261, 3
        %v771 = vrot.slane %v262, 3
        %v772 = vrot.slane %v263, 3
        %v773 = vrot.slane %v264, 3
        %v774 = vrot.slane %v265, 3
        %v775 = vrot.slane %v266, 3
        %v776 = vrot.slane %v267, 3
        %vm777 = vcmp.lt.s32.totalorder %v331, 5
        %v778 = vsel %vm777, %v775, %v776
        %v779 = vsel %vm777, %v774, %v775
        %v780 = vsel %vm777, %v773, %v774
        %v781 = vsel %vm777, %v772, %v773
        %v782 = vsel %vm777, %v771, %v772
        %v783 = vsel %vm777, %v770, %v771
        %v784 = vsel %vm777, %v769, %v770
        %v785 = vsel %vm777, %v768, %v769
        %v786 = vsel %vm777, %v767, %v768
        %v787 = vsel %vm777, %v766, %v767
        %v788 = vsel %vm777, %v765, %v766
        %v789 = vsel %vm777, %v764, %v765
        %v790 = vsel %vm777, %v763, %v764
        %v791 = vsel %vm777, %v762, %v763
        %v792 = vsel %vm777, %v761, %v762
        %v793 = vsel %vm777, %v760, %v761
        %v794 = vsel %vm777, %v759, %v760
        %v795 = vsel %vm777, %v758, %v759
        %v796 = vsel %vm777, %v757, %v758
        %v797 = vsel %vm777, %v756, %v757
        %v798 = vsel %vm777, %v755, %v756
        %v799 = vsel %vm777, %v754, %v755
        %v800 = vsel %vm777, %v753, %v754
        %v801 = vsel %vm777, %v752, %v753
        %v802 = vsel %vm777, %v751, %v752
        %v803 = vsel %vm777, %v750, %v751
        %v804 = vsel %vm777, %v749, %v750
        %v805 = vsel %vm777, %v748, %v749
        %v806 = vsel %vm777, %v747, %v748
        %v807 = vsel %vm777, %v746, %v747
        %v808 = vsel %vm777, %v745, %v746
        %v809 = vsel %vm777, %v744, %v745
        %v810 = vsel %vm777, %v743, %v744
        %v811 = vsel %vm777, %v742, %v743
        %v812 = vsel %vm777, %v741, %v742
        %v813 = vsel %vm777, %v740, %v741
        %v814 = vsel %vm777, %v739, %v740
        %v815 = vsel %vm777, %v738, %v739
        %v816 = vsel %vm777, %v737, %v738
        %v817 = vsel %vm777, %v736, %v737
        %v818 = vsel %vm777, %v776, %v736
        %v819 = vpack.c.bf16 %v814, %v815
        %v820 = vpack.c.bf16 %v812, %v813
        %v821 = vpack.c.bf16 %v810, %v811
        %v822 = vpack.c.bf16 %v808, %v809
        %v823 = vpack.c.bf16 %v806, %v807
        %v824 = vpack.c.bf16 %v804, %v805
        %v825 = vpack.c.bf16 %v802, %v803
        %v826 = vpack.c.bf16 %v800, %v801
        %v827 = vpack.c.bf16 %v798, %v799
        %v828 = vpack.c.bf16 %v796, %v797
        %v829 = vpack.c.bf16 %v794, %v795
        %v830 = vpack.c.bf16 %v792, %v793
        %v831 = vpack.c.bf16 %v790, %v791
        %v832 = vpack.c.bf16 %v788, %v789
        %v833 = vpack.c.bf16 %v786, %v787
        %v834 = vpack.c.bf16 %v784, %v785
        %v835 = vpack.c.bf16 %v782, %v783
        %v836 = vpack.c.bf16 %v780, %v781
        %v837 = vpack.c.bf16 %v778, %v779
        %v838 = vpack.c.bf16 %v817, %v818
        %v839 = vpack.c.bf16 %v816, %v816
        %v840 = vrot.slane %v227, 4
        %v841 = vrot.slane %v228, 4
        %v842 = vrot.slane %v229, 4
        %v843 = vrot.slane %v230, 4
        %v844 = vrot.slane %v231, 4
        %v845 = vrot.slane %v232, 4
        %v846 = vrot.slane %v233, 4
        %v847 = vrot.slane %v234, 4
        %v848 = vrot.slane %v235, 4
        %v849 = vrot.slane %v236, 4
        %v850 = vrot.slane %v237, 4
        %v851 = vrot.slane %v238, 4
        %v852 = vrot.slane %v239, 4
        %v853 = vrot.slane %v240, 4
        %v854 = vrot.slane %v241, 4
        %v855 = vrot.slane %v242, 4
        %v856 = vrot.slane %v243, 4
        %v857 = vrot.slane %v244, 4
        %v858 = vrot.slane %v245, 4
        %v859 = vrot.slane %v246, 4
        %v860 = vrot.slane %v247, 4
        %v861 = vrot.slane %v248, 4
        %v862 = vrot.slane %v249, 4
        %v863 = vrot.slane %v250, 4
        %v864 = vrot.slane %v251, 4
        %v865 = vrot.slane %v252, 4
        %v866 = vrot.slane %v253, 4
        %v867 = vrot.slane %v254, 4
        %v868 = vrot.slane %v255, 4
        %v869 = vrot.slane %v256, 4
        %v870 = vrot.slane %v257, 4
        %v871 = vrot.slane %v258, 4
        %v872 = vrot.slane %v259, 4
        %v873 = vrot.slane %v260, 4
        %v874 = vrot.slane %v261, 4
        %v875 = vrot.slane %v262, 4
        %v876 = vrot.slane %v263, 4
        %v877 = vrot.slane %v264, 4
        %v878 = vrot.slane %v265, 4
        %v879 = vrot.slane %v266, 4
        %v880 = vrot.slane %v267, 4
        %vm881 = vcmp.lt.s32.totalorder %v331, 4
        %v882 = vsel %vm881, %v879, %v880
        %v883 = vsel %vm881, %v878, %v879
        %v884 = vsel %vm881, %v877, %v878
        %v885 = vsel %vm881, %v876, %v877
        %v886 = vsel %vm881, %v875, %v876
        %v887 = vsel %vm881, %v874, %v875
        %v888 = vsel %vm881, %v873, %v874
        %v889 = vsel %vm881, %v872, %v873
        %v890 = vsel %vm881, %v871, %v872
        %v891 = vsel %vm881, %v870, %v871
        %v892 = vsel %vm881, %v869, %v870
        %v893 = vsel %vm881, %v868, %v869
        %v894 = vsel %vm881, %v867, %v868
        %v895 = vsel %vm881, %v866, %v867
        %v896 = vsel %vm881, %v865, %v866
        %v897 = vsel %vm881, %v864, %v865
        %v898 = vsel %vm881, %v863, %v864
        %v899 = vsel %vm881, %v862, %v863
        %v900 = vsel %vm881, %v861, %v862
        %v901 = vsel %vm881, %v860, %v861
        %v902 = vsel %vm881, %v859, %v860
        %v903 = vsel %vm881, %v858, %v859
        %v904 = vsel %vm881, %v857, %v858
        %v905 = vsel %vm881, %v856, %v857
        %v906 = vsel %vm881, %v855, %v856
        %v907 = vsel %vm881, %v854, %v855
        %v908 = vsel %vm881, %v853, %v854
        %v909 = vsel %vm881, %v852, %v853
        %v910 = vsel %vm881, %v851, %v852
        %v911 = vsel %vm881, %v850, %v851
        %v912 = vsel %vm881, %v849, %v850
        %v913 = vsel %vm881, %v848, %v849
        %v914 = vsel %vm881, %v847, %v848
        %v915 = vsel %vm881, %v846, %v847
        %v916 = vsel %vm881, %v845, %v846
        %v917 = vsel %vm881, %v844, %v845
        %v918 = vsel %vm881, %v843, %v844
        %v919 = vsel %vm881, %v842, %v843
        %v920 = vsel %vm881, %v841, %v842
        %v921 = vsel %vm881, %v840, %v841
        %v922 = vsel %vm881, %v880, %v840
        %v923 = vpack.c.bf16 %v918, %v919
        %v924 = vpack.c.bf16 %v916, %v917
        %v925 = vpack.c.bf16 %v914, %v915
        %v926 = vpack.c.bf16 %v912, %v913
        %v927 = vpack.c.bf16 %v910, %v911
        %v928 = vpack.c.bf16 %v908, %v909
        %v929 = vpack.c.bf16 %v906, %v907
        %v930 = vpack.c.bf16 %v904, %v905
        %v931 = vpack.c.bf16 %v902, %v903
        %v932 = vpack.c.bf16 %v900, %v901
        %v933 = vpack.c.bf16 %v898, %v899
        %v934 = vpack.c.bf16 %v896, %v897
        %v935 = vpack.c.bf16 %v894, %v895
        %v936 = vpack.c.bf16 %v892, %v893
        %v937 = vpack.c.bf16 %v890, %v891
        %v938 = vpack.c.bf16 %v888, %v889
        %v939 = vpack.c.bf16 %v886, %v887
        %v940 = vpack.c.bf16 %v884, %v885
        %v941 = vpack.c.bf16 %v882, %v883
        %v942 = vpack.c.bf16 %v921, %v922
        %v943 = vpack.c.bf16 %v920, %v920
        %965 = vrot.lane.b32.xlu0 %v819, 4
        %v966 = vpop.permute.xlu0 %965
        %967 = vrot.lane.b32.xlu0 %v820, 4
        %v968 = vpop.permute.xlu0 %967
        %969 = vrot.lane.b32.xlu0 %v821, 4
        %v970 = vpop.permute.xlu0 %969
        %971 = vrot.lane.b32.xlu0 %v822, 4
        %v972 = vpop.permute.xlu0 %971
        %973 = vrot.lane.b32.xlu0 %v823, 4
        %v974 = vpop.permute.xlu0 %973
        %975 = vrot.lane.b32.xlu0 %v824, 4
        %v976 = vpop.permute.xlu0 %975
        %977 = vrot.lane.b32.xlu0 %v825, 4
        %v978 = vpop.permute.xlu0 %977
        %979 = vrot.lane.b32.xlu0 %v826, 4
        %v980 = vpop.permute.xlu0 %979
        %981 = vrot.lane.b32.xlu0 %v827, 4
        %v982 = vpop.permute.xlu0 %981
        %983 = vrot.lane.b32.xlu0 %v828, 4
        %v984 = vpop.permute.xlu0 %983
        %985 = vrot.lane.b32.xlu0 %v829, 4
        %v986 = vpop.permute.xlu0 %985
        %987 = vrot.lane.b32.xlu0 %v830, 4
        %v988 = vpop.permute.xlu0 %987
        %989 = vrot.lane.b32.xlu0 %v831, 4
        %v990 = vpop.permute.xlu0 %989
        %991 = vrot.lane.b32.xlu0 %v832, 4
        %v992 = vpop.permute.xlu0 %991
        %993 = vrot.lane.b32.xlu0 %v833, 4
        %v994 = vpop.permute.xlu0 %993
        %995 = vrot.lane.b32.xlu0 %v834, 4
        %v996 = vpop.permute.xlu0 %995
        %997 = vrot.lane.b32.xlu0 %v835, 4
        %v998 = vpop.permute.xlu0 %997
        %999 = vrot.lane.b32.xlu0 %v836, 4
        %v1000 = vpop.permute.xlu0 %999
        %1001 = vrot.lane.b32.xlu0 %v837, 4
        %v1002 = vpop.permute.xlu0 %1001
        %1003 = vrot.lane.b32.xlu0 %v838, 4
        %v1004 = vpop.permute.xlu0 %1003
        %1005 = vrot.lane.b32.xlu0 %v839, 4
        %v1006 = vpop.permute.xlu0 %1005
        %1028 = vrot.lane.b32.xlu0 %v923, 8
        %v1029 = vpop.permute.xlu0 %1028
        %1030 = vrot.lane.b32.xlu0 %v924, 8
        %v1031 = vpop.permute.xlu0 %1030
        %1032 = vrot.lane.b32.xlu0 %v925, 8
        %v1033 = vpop.permute.xlu0 %1032
        %1034 = vrot.lane.b32.xlu0 %v926, 8
        %v1035 = vpop.permute.xlu0 %1034
        %1036 = vrot.lane.b32.xlu0 %v927, 8
        %v1037 = vpop.permute.xlu0 %1036
        %1038 = vrot.lane.b32.xlu0 %v928, 8
        %v1039 = vpop.permute.xlu0 %1038
        %1040 = vrot.lane.b32.xlu0 %v929, 8
        %v1041 = vpop.permute.xlu0 %1040
        %1042 = vrot.lane.b32.xlu0 %v930, 8
        %v1043 = vpop.permute.xlu0 %1042
        %1044 = vrot.lane.b32.xlu0 %v931, 8
        %v1045 = vpop.permute.xlu0 %1044
        %1046 = vrot.lane.b32.xlu0 %v932, 8
        %v1047 = vpop.permute.xlu0 %1046
        %1048 = vrot.lane.b32.xlu0 %v933, 8
        %v1049 = vpop.permute.xlu0 %1048
        %1050 = vrot.lane.b32.xlu0 %v934, 8
        %v1051 = vpop.permute.xlu0 %1050
        %1052 = vrot.lane.b32.xlu0 %v935, 8
        %v1053 = vpop.permute.xlu0 %1052
        %1054 = vrot.lane.b32.xlu0 %v936, 8
        %v1055 = vpop.permute.xlu0 %1054
        %1056 = vrot.lane.b32.xlu0 %v937, 8
        %v1057 = vpop.permute.xlu0 %1056
        %1058 = vrot.lane.b32.xlu0 %v938, 8
        %v1059 = vpop.permute.xlu0 %1058
        %1060 = vrot.lane.b32.xlu0 %v939, 8
        %v1061 = vpop.permute.xlu0 %1060
        %1062 = vrot.lane.b32.xlu0 %v940, 8
        %v1063 = vpop.permute.xlu0 %1062
        %1064 = vrot.lane.b32.xlu0 %v941, 8
        %v1065 = vpop.permute.xlu0 %1064
        %1066 = vrot.lane.b32.xlu0 %v942, 8
        %v1067 = vpop.permute.xlu0 %1066
        %1068 = vrot.lane.b32.xlu0 %v943, 8
        %v1069 = vpop.permute.xlu0 %1068
        %v1072 = vsel %vm625, %v479, %v966
        %v1075 = vsel %vm625, %v480, %v968
        %v1078 = vsel %vm625, %v481, %v970
        %v1081 = vsel %vm625, %v482, %v972
        %v1084 = vsel %vm625, %v483, %v974
        %v1087 = vsel %vm625, %v484, %v976
        %v1090 = vsel %vm625, %v485, %v978
        %v1093 = vsel %vm625, %v486, %v980
        %v1096 = vsel %vm625, %v487, %v982
        %v1099 = vsel %vm625, %v488, %v984
        %v1102 = vsel %vm625, %v489, %v986
        %v1105 = vsel %vm625, %v490, %v988
        %v1108 = vsel %vm625, %v491, %v990
        %v1111 = vsel %vm625, %v492, %v992
        %v1114 = vsel %vm625, %v493, %v994
        %v1117 = vsel %vm625, %v494, %v996
        %v1120 = vsel %vm625, %v495, %v998
        %v1123 = vsel %vm625, %v496, %v1000
        %v1126 = vsel %vm625, %v497, %v1002
        %v1129 = vsel %vm625, %v734, %v1004
        %v1132 = vsel %vm625, %v735, %v1006
        %v1134 = vsel %vm689, %v1072, %v1029
        %v1136 = vsel %vm689, %v1075, %v1031
        %v1138 = vsel %vm689, %v1078, %v1033
        %v1140 = vsel %vm689, %v1081, %v1035
        %v1142 = vsel %vm689, %v1084, %v1037
        %v1144 = vsel %vm689, %v1087, %v1039
        %v1146 = vsel %vm689, %v1090, %v1041
        %v1148 = vsel %vm689, %v1093, %v1043
        %v1150 = vsel %vm689, %v1096, %v1045
        %v1152 = vsel %vm689, %v1099, %v1047
        %v1154 = vsel %vm689, %v1102, %v1049
        %v1156 = vsel %vm689, %v1105, %v1051
        %v1158 = vsel %vm689, %v1108, %v1053
        %v1160 = vsel %vm689, %v1111, %v1055
        %v1162 = vsel %vm689, %v1114, %v1057
        %v1164 = vsel %vm689, %v1117, %v1059
        %v1166 = vsel %vm689, %v1120, %v1061
        %v1168 = vsel %vm689, %v1123, %v1063
        %v1170 = vsel %vm689, %v1126, %v1065
        %v1172 = vsel %vm689, %v1129, %v1067
        %v1174 = vsel %vm689, %v1132, %v1069
        %s1175 = scalar_lea.vmem %s1, 8
        %v1176 = vld [vmem:[%s1175] sm:$0xf]
        %v1177 = vld [vmem:[%s1175 + $0x4] sm:$0x3]
        %v1180 = vunpack.c.l.b16 %v1176
        %v1181 = vunpack.c.l.b16 %v1177
        %v1182 = vpack.c.b16 %v1181, %v1180
        %vm1183 = vcmask 97280
        %v1184 = vsel %vm1183, %v1134, 0
        %v1186 = vsel %vm1183, %v1136, 0
        %v1188 = vsel %vm1183, %v1138, 0
        %v1190 = vsel %vm1183, %v1140, 0
        %v1192 = vsel %vm1183, %v1142, 0
        %v1194 = vsel %vm1183, %v1144, 0
        %v1196 = vsel %vm1183, %v1146, 0
        %v1198 = vsel %vm1183, %v1148, 0
        %v1200 = vsel %vm1183, %v1150, 0
        %v1202 = vsel %vm1183, %v1152, 0
        %v1204 = vsel %vm1183, %v1154, 0
        %v1206 = vsel %vm1183, %v1156, 0
        %v1208 = vsel %vm1183, %v1158, 0
        %v1210 = vsel %vm1183, %v1160, 0
        %v1212 = vsel %vm1183, %v1162, 0
        %v1214 = vsel %vm1183, %v1164, 0
        %v1216 = vsel %vm1183, %v1166, 0
        %v1218 = vsel %vm1183, %v1168, 0
        %v1220 = vsel %vm1183, %v1170, 0
        %v1222 = vsel %vm1183, %v1172, 0
        %v1224 = vsel %vm1183, %v1174, 0
        %vm1226 = vcmask 1045504
        %v1228 = vsel %vm1226, %v1182, 0
        %1230 = vmatprep.subr.bf16.mxu0 0
        %1231 = vmatpush1.bf16.msra.mxu0 %v1228
        %1232 = vmatprep.subr.bf16.mxu0 0
        %1233 = vmatpush1.bf16.msra.mxu0 0
        %1234 = vmatprep.subr.bf16.mxu0 0
        %1235 = vmatpush1.bf16.msra.mxu0 0
        %1236 = vmatprep.subr.bf16.mxu0 0
        %1237 = vmatpush1.bf16.msra.mxu0 0
        %1238 = vmatprep.subr.bf16.mxu0 0
        %1239 = vmatpush1.bf16.msra.mxu0 0
        %1240 = vmatprep.subr.bf16.mxu0 0
        %1241 = vmatpush1.bf16.msra.mxu0 0
        %1242 = vmatprep.subr.bf16.mxu0 0
        %1243 = vmatpush1.bf16.msra.mxu0 0
        %1244 = vmatprep.subr.bf16.mxu0 0
        %1245 = vmatpush1.bf16.msra.mxu0 0
        %1246 = vmatprep.subr.bf16.mxu0 0
        %1247 = vmatpush1.bf16.msra.mxu0 0
        %1248 = vmatprep.subr.bf16.mxu0 0
        %1249 = vmatpush1.bf16.msra.mxu0 0
        %1250 = vmatprep.subr.bf16.mxu0 0
        %1251 = vmatpush1.bf16.msra.mxu0 0
        %1252 = vmatprep.subr.bf16.mxu0 0
        %1253 = vmatpush1.bf16.msra.mxu0 0
        %1254 = vmatprep.subr.bf16.mxu0 0
        %1255 = vmatpush1.bf16.msra.mxu0 0
        %1256 = vmatprep.subr.bf16.mxu0 0
        %1257 = vmatpush1.bf16.msra.mxu0 0
        %1258 = vmatprep.subr.bf16.mxu0 0
        %1259 = vmatpush1.bf16.msra.mxu0 0
        %1260 = vmatprep.subr.bf16.mxu0 0
        %1261 = vmatpush1.bf16.msra.mxu0 0
        %1262 = vmatprep.mubr.bf16.mxu0 0
        %1263 = vmatmul.mubr.bf16.gmra.mrb[0].mxu0 %v1184
        %v1264 = vpop.f32.mrb[0].mxu0
        %v1265 = vadd.f32 0.0, %v1264
        %v1266 = vpop.f32.mrb[0].mxu0
        %v1267 = vpop.f32.mrb[0].mxu0
        %v1268 = vadd.f32 0.0, %v1267
        %v1269 = vpop.f32.mrb[0].mxu0
        %1270 = vmatprep.mubr.bf16.mxu0 0
        %1271 = vmatmul.mubr.bf16.gmra.mrb[0].mxu0 %v1186
        %v1272 = vpop.f32.mrb[0].mxu0
        %v1273 = vadd.f32 0.0, %v1272
        %v1274 = vpop.f32.mrb[0].mxu0
        %v1275 = vpop.f32.mrb[0].mxu0
        %v1276 = vadd.f32 0.0, %v1275
        %v1277 = vpop.f32.mrb[0].mxu0
        %1278 = vmatprep.mubr.bf16.mxu0 0
        %1279 = vmatmul.mubr.bf16.gmra.mrb[0].mxu0 %v1188
        %v1280 = vpop.f32.mrb[0].mxu0
        %v1281 = vadd.f32 0.0, %v1280
        %v1282 = vpop.f32.mrb[0].mxu0
        %v1283 = vpop.f32.mrb[0].mxu0
        %v1284 = vadd.f32 0.0, %v1283
        %v1285 = vpop.f32.mrb[0].mxu0
        %1286 = vmatprep.mubr.bf16.mxu0 0
        %1287 = vmatmul.mubr.bf16.gmra.mrb[0].mxu0 %v1190
        %v1288 = vpop.f32.mrb[0].mxu0
        %v1289 = vadd.f32 0.0, %v1288
        %v1290 = vpop.f32.mrb[0].mxu0
        %v1291 = vpop.f32.mrb[0].mxu0
        %v1292 = vadd.f32 0.0, %v1291
        %v1293 = vpop.f32.mrb[0].mxu0
        %1294 = vmatprep.mubr.bf16.mxu0 0
        %1295 = vmatmul.mubr.bf16.gmra.mrb[0].mxu0 %v1192
        %v1296 = vpop.f32.mrb[0].mxu0
        %v1297 = vadd.f32 0.0, %v1296
        %v1298 = vpop.f32.mrb[0].mxu0
        %v1299 = vpop.f32.mrb[0].mxu0
        %v1300 = vadd.f32 0.0, %v1299
        %v1301 = vpop.f32.mrb[0].mxu0
        %1302 = vmatprep.mubr.bf16.mxu0 0
        %1303 = vmatmul.mubr.bf16.gmra.mrb[0].mxu0 %v1194
        %v1304 = vpop.f32.mrb[0].mxu0
        %v1305 = vadd.f32 0.0, %v1304
        %v1306 = vpop.f32.mrb[0].mxu0
        %v1307 = vpop.f32.mrb[0].mxu0
        %v1308 = vadd.f32 0.0, %v1307
        %v1309 = vpop.f32.mrb[0].mxu0
        %1310 = vmatprep.mubr.bf16.mxu0 0
        %1311 = vmatmul.mubr.bf16.gmra.mrb[0].mxu0 %v1196
        %v1312 = vpop.f32.mrb[0].mxu0
        %v1313 = vadd.f32 0.0, %v1312
        %v1314 = vpop.f32.mrb[0].mxu0
        %v1315 = vpop.f32.mrb[0].mxu0
        %v1316 = vadd.f32 0.0, %v1315
        %v1317 = vpop.f32.mrb[0].mxu0
        %1318 = vmatprep.mubr.bf16.mxu0 0
        %1319 = vmatmul.mubr.bf16.gmra.mrb[0].mxu0 %v1198
        %v1320 = vpop.f32.mrb[0].mxu0
        %v1321 = vadd.f32 0.0, %v1320
        %v1322 = vpop.f32.mrb[0].mxu0
        %v1323 = vpop.f32.mrb[0].mxu0
        %v1324 = vadd.f32 0.0, %v1323
        %v1325 = vpop.f32.mrb[0].mxu0
        %1326 = vmatprep.mubr.bf16.mxu0 0
        %1327 = vmatmul.mubr.bf16.gmra.mrb[0].mxu0 %v1200
        %v1328 = vpop.f32.mrb[0].mxu0
        %v1329 = vadd.f32 0.0, %v1328
        %v1330 = vpop.f32.mrb[0].mxu0
        %v1331 = vpop.f32.mrb[0].mxu0
        %v1332 = vadd.f32 0.0, %v1331
        %v1333 = vpop.f32.mrb[0].mxu0
        %1334 = vmatprep.mubr.bf16.mxu0 0
        %1335 = vmatmul.mubr.bf16.gmra.mrb[0].mxu0 %v1202
        %v1336 = vpop.f32.mrb[0].mxu0
        %v1337 = vadd.f32 0.0, %v1336
        %v1338 = vpop.f32.mrb[0].mxu0
        %v1339 = vpop.f32.mrb[0].mxu0
        %v1340 = vadd.f32 0.0, %v1339
        %v1341 = vpop.f32.mrb[0].mxu0
        %1342 = vmatprep.mubr.bf16.mxu0 0
        %1343 = vmatmul.mubr.bf16.gmra.mrb[0].mxu0 %v1204
        %v1344 = vpop.f32.mrb[0].mxu0
        %v1345 = vadd.f32 0.0, %v1344
        %v1346 = vpop.f32.mrb[0].mxu0
        %v1347 = vpop.f32.mrb[0].mxu0
        %v1348 = vadd.f32 0.0, %v1347
        %v1349 = vpop.f32.mrb[0].mxu0
        %1350 = vmatprep.mubr.bf16.mxu0 0
        %1351 = vmatmul.mubr.bf16.gmra.mrb[0].mxu0 %v1206
        %v1352 = vpop.f32.mrb[0].mxu0
        %v1353 = vadd.f32 0.0, %v1352
        %v1354 = vpop.f32.mrb[0].mxu0
        %v1355 = vpop.f32.mrb[0].mxu0
        %v1356 = vadd.f32 0.0, %v1355
        %v1357 = vpop.f32.mrb[0].mxu0
        %1358 = vmatprep.mubr.bf16.mxu0 0
        %1359 = vmatmul.mubr.bf16.gmra.mrb[0].mxu0 %v1208
        %v1360 = vpop.f32.mrb[0].mxu0
        %v1361 = vadd.f32 0.0, %v1360
        %v1362 = vpop.f32.mrb[0].mxu0
        %v1363 = vpop.f32.mrb[0].mxu0
        %v1364 = vadd.f32 0.0, %v1363
        %v1365 = vpop.f32.mrb[0].mxu0
        %1366 = vmatprep.mubr.bf16.mxu0 0
        %1367 = vmatmul.mubr.bf16.gmra.mrb[0].mxu0 %v1210
        %v1368 = vpop.f32.mrb[0].mxu0
        %v1369 = vadd.f32 0.0, %v1368
        %v1370 = vpop.f32.mrb[0].mxu0
        %v1371 = vpop.f32.mrb[0].mxu0
        %v1372 = vadd.f32 0.0, %v1371
        %v1373 = vpop.f32.mrb[0].mxu0
        %1374 = vmatprep.mubr.bf16.mxu0 0
        %1375 = vmatmul.mubr.bf16.gmra.mrb[0].mxu0 %v1212
        %v1376 = vpop.f32.mrb[0].mxu0
        %v1377 = vadd.f32 0.0, %v1376
        %v1378 = vpop.f32.mrb[0].mxu0
        %v1379 = vpop.f32.mrb[0].mxu0
        %v1380 = vadd.f32 0.0, %v1379
        %v1381 = vpop.f32.mrb[0].mxu0
        %1382 = vmatprep.mubr.bf16.mxu0 0
        %1383 = vmatmul.mubr.bf16.gmra.mrb[0].mxu0 %v1214
        %v1384 = vpop.f32.mrb[0].mxu0
        %v1385 = vadd.f32 0.0, %v1384
        %v1386 = vpop.f32.mrb[0].mxu0
        %v1387 = vpop.f32.mrb[0].mxu0
        %v1388 = vadd.f32 0.0, %v1387
        %v1389 = vpop.f32.mrb[0].mxu0
        %1390 = vmatprep.mubr.bf16.mxu0 0
        %1391 = vmatmul.mubr.bf16.gmra.mrb[0].mxu0 %v1216
        %v1392 = vpop.f32.mrb[0].mxu0
        %v1393 = vadd.f32 0.0, %v1392
        %v1394 = vpop.f32.mrb[0].mxu0
        %v1395 = vpop.f32.mrb[0].mxu0
        %v1396 = vadd.f32 0.0, %v1395
        %v1397 = vpop.f32.mrb[0].mxu0
        %1398 = vmatprep.mubr.bf16.mxu0 0
        %1399 = vmatmul.mubr.bf16.gmra.mrb[0].mxu0 %v1218
        %v1400 = vpop.f32.mrb[0].mxu0
        %v1401 = vadd.f32 0.0, %v1400
        %v1402 = vpop.f32.mrb[0].mxu0
        %v1403 = vpop.f32.mrb[0].mxu0
        %v1404 = vadd.f32 0.0, %v1403
        %v1405 = vpop.f32.mrb[0].mxu0
        %1406 = vmatprep.mubr.bf16.mxu0 0
        %1407 = vmatmul.mubr.bf16.gmra.mrb[0].mxu0 %v1220
        %v1408 = vpop.f32.mrb[0].mxu0
        %v1409 = vadd.f32 0.0, %v1408
        %v1410 = vpop.f32.mrb[0].mxu0
        %v1411 = vpop.f32.mrb[0].mxu0
        %v1412 = vadd.f32 0.0, %v1411
        %v1413 = vpop.f32.mrb[0].mxu0
        %1414 = vmatprep.mubr.bf16.mxu0 0
        %1415 = vmatmul.mubr.bf16.gmra.mrb[0].mxu0 %v1222
        %v1416 = vpop.f32.mrb[0].mxu0
        %v1417 = vadd.f32 0.0, %v1416
        %v1418 = vpop.f32.mrb[0].mxu0
        %v1419 = vpop.f32.mrb[0].mxu0
        %v1420 = vadd.f32 0.0, %v1419
        %v1421 = vpop.f32.mrb[0].mxu0
        %1422 = vmatprep.mubr.bf16.mxu0 0
        %1423 = vmatmul.mubr.bf16.gmra.mrb[0].mxu0 %v1224
        %v1424 = vpop.f32.mrb[0].mxu0
        %v1425 = vadd.f32 0.0, %v1424
        %v1426 = vpop.f32.mrb[0].mxu0
        %v1427 = vpop.f32.mrb[0].mxu0
        %v1428 = vpop.f32.mrb[0].mxu0
        %1429 = vdwg.mxu0
        %v1432 = vunpack.c.l.b16 %v732
        %v1433 = vunpack.c.l.b16 %v733
        %v1434 = vpack.c.b16 %v1433, %v1432
        %v1435 = vsel %vm1183, %v691, 0
        %v1437 = vsel %vm1183, %v693, 0
        %v1439 = vsel %vm1183, %v695, 0
        %v1441 = vsel %vm1183, %v697, 0
        %v1443 = vsel %vm1183, %v699, 0
        %v1445 = vsel %vm1183, %v701, 0
        %v1447 = vsel %vm1183, %v703, 0
        %v1449 = vsel %vm1183, %v705, 0
        %v1451 = vsel %vm1183, %v707, 0
        %v1453 = vsel %vm1183, %v709, 0
        %v1455 = vsel %vm1183, %v711, 0
        %v1457 = vsel %vm1183, %v713, 0
        %v1459 = vsel %vm1183, %v715, 0
        %v1461 = vsel %vm1183, %v717, 0
        %v1463 = vsel %vm1183, %v719, 0
        %v1465 = vsel %vm1183, %v721, 0
        %v1467 = vsel %vm1183, %v723, 0
        %v1469 = vsel %vm1183, %v725, 0
        %v1471 = vsel %vm1183, %v727, 0
        %v1473 = vsel %vm1183, %v729, 0
        %v1475 = vsel %vm1183, %v731, 0
        %v1478 = vsel %vm1226, %v1434, 0
        %1480 = vmatprep.subr.bf16.mxu0 0
        %1481 = vmatpush1.bf16.msra.mxu0 %v1478
        %1482 = vmatprep.subr.bf16.mxu0 0
        %1483 = vmatpush1.bf16.msra.mxu0 0
        %1484 = vmatprep.subr.bf16.mxu0 0
        %1485 = vmatpush1.bf16.msra.mxu0 0
        %1486 = vmatprep.subr.bf16.mxu0 0
        %1487 = vmatpush1.bf16.msra.mxu0 0
        %1488 = vmatprep.subr.bf16.mxu0 0
        %1489 = vmatpush1.bf16.msra.mxu0 0
        %1490 = vmatprep.subr.bf16.mxu0 0
        %1491 = vmatpush1.bf16.msra.mxu0 0
        %1492 = vmatprep.subr.bf16.mxu0 0
        %1493 = vmatpush1.bf16.msra.mxu0 0
        %1494 = vmatprep.subr.bf16.mxu0 0
        %1495 = vmatpush1.bf16.msra.mxu0 0
        %1496 = vmatprep.subr.bf16.mxu0 0
        %1497 = vmatpush1.bf16.msra.mxu0 0
        %1498 = vmatprep.subr.bf16.mxu0 0
        %1499 = vmatpush1.bf16.msra.mxu0 0
        %1500 = vmatprep.subr.bf16.mxu0 0
        %1501 = vmatpush1.bf16.msra.mxu0 0
        %1502 = vmatprep.subr.bf16.mxu0 0
        %1503 = vmatpush1.bf16.msra.mxu0 0
        %1504 = vmatprep.subr.bf16.mxu0 0
        %1505 = vmatpush1.bf16.msra.mxu0 0
        %1506 = vmatprep.subr.bf16.mxu0 0
        %1507 = vmatpush1.bf16.msra.mxu0 0
        %1508 = vmatprep.subr.bf16.mxu0 0
        %1509 = vmatpush1.bf16.msra.mxu0 0
        %1510 = vmatprep.subr.bf16.mxu0 0
        %1511 = vmatpush1.bf16.msra.mxu0 0
        %1512 = vmatprep.mubr.bf16.mxu0 0
        %1513 = vmatmul.mubr.bf16.gmra.mrb[0].mxu0 %v1435
        %v1514 = vpop.f32.mrb[0].mxu0
        %v1515 = vadd.f32 %v1265, %v1514
        %v1516 = vpop.f32.mrb[0].mxu0
        %v1517 = vpop.f32.mrb[0].mxu0
        %v1518 = vadd.f32 %v1268, %v1517
        %v1519 = vpop.f32.mrb[0].mxu0
        %1520 = vmatprep.mubr.bf16.mxu0 0
        %1521 = vmatmul.mubr.bf16.gmra.mrb[0].mxu0 %v1437
        %v1522 = vpop.f32.mrb[0].mxu0
        %v1523 = vadd.f32 %v1273, %v1522
        %v1524 = vpop.f32.mrb[0].mxu0
        %v1525 = vpop.f32.mrb[0].mxu0
        %v1526 = vadd.f32 %v1276, %v1525
        %v1527 = vpop.f32.mrb[0].mxu0
        %1528 = vmatprep.mubr.bf16.mxu0 0
        %1529 = vmatmul.mubr.bf16.gmra.mrb[0].mxu0 %v1439
        %v1530 = vpop.f32.mrb[0].mxu0
        %v1531 = vadd.f32 %v1281, %v1530
        %v1532 = vpop.f32.mrb[0].mxu0
        %v1533 = vpop.f32.mrb[0].mxu0
        %v1534 = vadd.f32 %v1284, %v1533
        %v1535 = vpop.f32.mrb[0].mxu0
        %1536 = vmatprep.mubr.bf16.mxu0 0
        %1537 = vmatmul.mubr.bf16.gmra.mrb[0].mxu0 %v1441
        %v1538 = vpop.f32.mrb[0].mxu0
        %v1539 = vadd.f32 %v1289, %v1538
        %v1540 = vpop.f32.mrb[0].mxu0
        %v1541 = vpop.f32.mrb[0].mxu0
        %v1542 = vadd.f32 %v1292, %v1541
        %v1543 = vpop.f32.mrb[0].mxu0
        %1544 = vmatprep.mubr.bf16.mxu0 0
        %1545 = vmatmul.mubr.bf16.gmra.mrb[0].mxu0 %v1443
        %v1546 = vpop.f32.mrb[0].mxu0
        %v1547 = vadd.f32 %v1297, %v1546
        %v1548 = vpop.f32.mrb[0].mxu0
        %v1549 = vpop.f32.mrb[0].mxu0
        %v1550 = vadd.f32 %v1300, %v1549
        %v1551 = vpop.f32.mrb[0].mxu0
        %1552 = vmatprep.mubr.bf16.mxu0 0
        %1553 = vmatmul.mubr.bf16.gmra.mrb[0].mxu0 %v1445
        %v1554 = vpop.f32.mrb[0].mxu0
        %v1555 = vadd.f32 %v1305, %v1554
        %v1556 = vpop.f32.mrb[0].mxu0
        %v1557 = vpop.f32.mrb[0].mxu0
        %v1558 = vadd.f32 %v1308, %v1557
        %v1559 = vpop.f32.mrb[0].mxu0
        %1560 = vmatprep.mubr.bf16.mxu0 0
        %1561 = vmatmul.mubr.bf16.gmra.mrb[0].mxu0 %v1447
        %v1562 = vpop.f32.mrb[0].mxu0
        %v1563 = vadd.f32 %v1313, %v1562
        %v1564 = vpop.f32.mrb[0].mxu0
        %v1565 = vpop.f32.mrb[0].mxu0
        %v1566 = vadd.f32 %v1316, %v1565
        %v1567 = vpop.f32.mrb[0].mxu0
        %1568 = vmatprep.mubr.bf16.mxu0 0
        %1569 = vmatmul.mubr.bf16.gmra.mrb[0].mxu0 %v1449
        %v1570 = vpop.f32.mrb[0].mxu0
        %v1571 = vadd.f32 %v1321, %v1570
        %v1572 = vpop.f32.mrb[0].mxu0
        %v1573 = vpop.f32.mrb[0].mxu0
        %v1574 = vadd.f32 %v1324, %v1573
        %v1575 = vpop.f32.mrb[0].mxu0
        %1576 = vmatprep.mubr.bf16.mxu0 0
        %1577 = vmatmul.mubr.bf16.gmra.mrb[0].mxu0 %v1451
        %v1578 = vpop.f32.mrb[0].mxu0
        %v1579 = vadd.f32 %v1329, %v1578
        %v1580 = vpop.f32.mrb[0].mxu0
        %v1581 = vpop.f32.mrb[0].mxu0
        %v1582 = vadd.f32 %v1332, %v1581
        %v1583 = vpop.f32.mrb[0].mxu0
        %1584 = vmatprep.mubr.bf16.mxu0 0
        %1585 = vmatmul.mubr.bf16.gmra.mrb[0].mxu0 %v1453
        %v1586 = vpop.f32.mrb[0].mxu0
        %v1587 = vadd.f32 %v1337, %v1586
        %v1588 = vpop.f32.mrb[0].mxu0
        %v1589 = vpop.f32.mrb[0].mxu0
        %v1590 = vadd.f32 %v1340, %v1589
        %v1591 = vpop.f32.mrb[0].mxu0
        %1592 = vmatprep.mubr.bf16.mxu0 0
        %1593 = vmatmul.mubr.bf16.gmra.mrb[0].mxu0 %v1455
        %v1594 = vpop.f32.mrb[0].mxu0
        %v1595 = vadd.f32 %v1345, %v1594
        %v1596 = vpop.f32.mrb[0].mxu0
        %v1597 = vpop.f32.mrb[0].mxu0
        %v1598 = vadd.f32 %v1348, %v1597
        %v1599 = vpop.f32.mrb[0].mxu0
        %1600 = vmatprep.mubr.bf16.mxu0 0
        %1601 = vmatmul.mubr.bf16.gmra.mrb[0].mxu0 %v1457
        %v1602 = vpop.f32.mrb[0].mxu0
        %v1603 = vadd.f32 %v1353, %v1602
        %v1604 = vpop.f32.mrb[0].mxu0
        %v1605 = vpop.f32.mrb[0].mxu0
        %v1606 = vadd.f32 %v1356, %v1605
        %v1607 = vpop.f32.mrb[0].mxu0
        %1608 = vmatprep.mubr.bf16.mxu0 0
        %1609 = vmatmul.mubr.bf16.gmra.mrb[0].mxu0 %v1459
        %v1610 = vpop.f32.mrb[0].mxu0
        %v1611 = vadd.f32 %v1361, %v1610
        %v1612 = vpop.f32.mrb[0].mxu0
        %v1613 = vpop.f32.mrb[0].mxu0
        %v1614 = vadd.f32 %v1364, %v1613
        %v1615 = vpop.f32.mrb[0].mxu0
        %1616 = vmatprep.mubr.bf16.mxu0 0
        %1617 = vmatmul.mubr.bf16.gmra.mrb[0].mxu0 %v1461
        %v1618 = vpop.f32.mrb[0].mxu0
        %v1619 = vadd.f32 %v1369, %v1618
        %v1620 = vpop.f32.mrb[0].mxu0
        %v1621 = vpop.f32.mrb[0].mxu0
        %v1622 = vadd.f32 %v1372, %v1621
        %v1623 = vpop.f32.mrb[0].mxu0
        %1624 = vmatprep.mubr.bf16.mxu0 0
        %1625 = vmatmul.mubr.bf16.gmra.mrb[0].mxu0 %v1463
        %v1626 = vpop.f32.mrb[0].mxu0
        %v1627 = vadd.f32 %v1377, %v1626
        %v1628 = vpop.f32.mrb[0].mxu0
        %v1629 = vpop.f32.mrb[0].mxu0
        %v1630 = vadd.f32 %v1380, %v1629
        %v1631 = vpop.f32.mrb[0].mxu0
        %1632 = vmatprep.mubr.bf16.mxu0 0
        %1633 = vmatmul.mubr.bf16.gmra.mrb[0].mxu0 %v1465
        %v1634 = vpop.f32.mrb[0].mxu0
        %v1635 = vadd.f32 %v1385, %v1634
        %v1636 = vpop.f32.mrb[0].mxu0
        %v1637 = vpop.f32.mrb[0].mxu0
        %v1638 = vadd.f32 %v1388, %v1637
        %v1639 = vpop.f32.mrb[0].mxu0
        %1640 = vmatprep.mubr.bf16.mxu0 0
        %1641 = vmatmul.mubr.bf16.gmra.mrb[0].mxu0 %v1467
        %v1642 = vpop.f32.mrb[0].mxu0
        %v1643 = vadd.f32 %v1393, %v1642
        %v1644 = vpop.f32.mrb[0].mxu0
        %v1645 = vpop.f32.mrb[0].mxu0
        %v1646 = vadd.f32 %v1396, %v1645
        %v1647 = vpop.f32.mrb[0].mxu0
        %1648 = vmatprep.mubr.bf16.mxu0 0
        %1649 = vmatmul.mubr.bf16.gmra.mrb[0].mxu0 %v1469
        %v1650 = vpop.f32.mrb[0].mxu0
        %v1651 = vadd.f32 %v1401, %v1650
        %v1652 = vpop.f32.mrb[0].mxu0
        %v1653 = vpop.f32.mrb[0].mxu0
        %v1654 = vadd.f32 %v1404, %v1653
        %v1655 = vpop.f32.mrb[0].mxu0
        %1656 = vmatprep.mubr.bf16.mxu0 0
        %1657 = vmatmul.mubr.bf16.gmra.mrb[0].mxu0 %v1471
        %v1658 = vpop.f32.mrb[0].mxu0
        %v1659 = vadd.f32 %v1409, %v1658
        %v1660 = vpop.f32.mrb[0].mxu0
        %v1661 = vpop.f32.mrb[0].mxu0
        %v1662 = vadd.f32 %v1412, %v1661
        %v1663 = vpop.f32.mrb[0].mxu0
        %1664 = vmatprep.mubr.bf16.mxu0 0
        %1665 = vmatmul.mubr.bf16.gmra.mrb[0].mxu0 %v1473
        %v1666 = vpop.f32.mrb[0].mxu0
        %v1667 = vadd.f32 %v1417, %v1666
        %v1668 = vpop.f32.mrb[0].mxu0
        %v1669 = vpop.f32.mrb[0].mxu0
        %v1670 = vadd.f32 %v1420, %v1669
        %v1671 = vpop.f32.mrb[0].mxu0
        %1672 = vmatprep.mubr.bf16.mxu0 0
        %1673 = vmatmul.mubr.bf16.gmra.mrb[0].mxu0 %v1475
        %v1674 = vpop.f32.mrb[0].mxu0
        %v1675 = vadd.f32 %v1425, %v1674
        %v1676 = vpop.f32.mrb[0].mxu0
        %v1677 = vpop.f32.mrb[0].mxu0
        %v1678 = vpop.f32.mrb[0].mxu0
        %1679 = vdwg.mxu0
        %v1680 = vpack.c.bf16 %v919, %v920
        %v1681 = vpack.c.bf16 %v918, %v918
        %v1682 = vrot.slane %v227, 5
        %v1683 = vrot.slane %v228, 5
        %v1684 = vrot.slane %v229, 5
        %v1685 = vrot.slane %v230, 5
        %v1686 = vrot.slane %v231, 5
        %v1687 = vrot.slane %v232, 5
        %v1688 = vrot.slane %v233, 5
        %v1689 = vrot.slane %v234, 5
        %v1690 = vrot.slane %v235, 5
        %v1691 = vrot.slane %v236, 5
        %v1692 = vrot.slane %v237, 5
        %v1693 = vrot.slane %v238, 5
        %v1694 = vrot.slane %v239, 5
        %v1695 = vrot.slane %v240, 5
        %v1696 = vrot.slane %v241, 5
        %v1697 = vrot.slane %v242, 5
        %v1698 = vrot.slane %v243, 5
        %v1699 = vrot.slane %v244, 5
        %v1700 = vrot.slane %v245, 5
        %v1701 = vrot.slane %v246, 5
        %v1702 = vrot.slane %v247, 5
        %v1703 = vrot.slane %v248, 5
        %v1704 = vrot.slane %v249, 5
        %v1705 = vrot.slane %v250, 5
        %v1706 = vrot.slane %v251, 5
        %v1707 = vrot.slane %v252, 5
        %v1708 = vrot.slane %v253, 5
        %v1709 = vrot.slane %v254, 5
        %v1710 = vrot.slane %v255, 5
        %v1711 = vrot.slane %v256, 5
        %v1712 = vrot.slane %v257, 5
        %v1713 = vrot.slane %v258, 5
        %v1714 = vrot.slane %v259, 5
        %v1715 = vrot.slane %v260, 5
        %v1716 = vrot.slane %v261, 5
        %v1717 = vrot.slane %v262, 5
        %v1718 = vrot.slane %v263, 5
        %v1719 = vrot.slane %v264, 5
        %v1720 = vrot.slane %v265, 5
        %v1721 = vrot.slane %v266, 5
        %v1722 = vrot.slane %v267, 5
        %vm1723 = vcmp.lt.s32.totalorder %v331, 3
        %v1724 = vsel %vm1723, %v1721, %v1722
        %v1725 = vsel %vm1723, %v1720, %v1721
        %v1726 = vsel %vm1723, %v1719, %v1720
        %v1727 = vsel %vm1723, %v1718, %v1719
        %v1728 = vsel %vm1723, %v1717, %v1718
        %v1729 = vsel %vm1723, %v1716, %v1717
        %v1730 = vsel %vm1723, %v1715, %v1716
        %v1731 = vsel %vm1723, %v1714, %v1715
        %v1732 = vsel %vm1723, %v1713, %v1714
        %v1733 = vsel %vm1723, %v1712, %v1713
        %v1734 = vsel %vm1723, %v1711, %v1712
        %v1735 = vsel %vm1723, %v1710, %v1711
        %v1736 = vsel %vm1723, %v1709, %v1710
        %v1737 = vsel %vm1723, %v1708, %v1709
        %v1738 = vsel %vm1723, %v1707, %v1708
        %v1739 = vsel %vm1723, %v1706, %v1707
        %v1740 = vsel %vm1723, %v1705, %v1706
        %v1741 = vsel %vm1723, %v1704, %v1705
        %v1742 = vsel %vm1723, %v1703, %v1704
        %v1743 = vsel %vm1723, %v1702, %v1703
        %v1744 = vsel %vm1723, %v1701, %v1702
        %v1745 = vsel %vm1723, %v1700, %v1701
        %v1746 = vsel %vm1723, %v1699, %v1700
        %v1747 = vsel %vm1723, %v1698, %v1699
        %v1748 = vsel %vm1723, %v1697, %v1698
        %v1749 = vsel %vm1723, %v1696, %v1697
        %v1750 = vsel %vm1723, %v1695, %v1696
        %v1751 = vsel %vm1723, %v1694, %v1695
        %v1752 = vsel %vm1723, %v1693, %v1694
        %v1753 = vsel %vm1723, %v1692, %v1693
        %v1754 = vsel %vm1723, %v1691, %v1692
        %v1755 = vsel %vm1723, %v1690, %v1691
        %v1756 = vsel %vm1723, %v1689, %v1690
        %v1757 = vsel %vm1723, %v1688, %v1689
        %v1758 = vsel %vm1723, %v1687, %v1688
        %v1759 = vsel %vm1723, %v1686, %v1687
        %v1760 = vsel %vm1723, %v1685, %v1686
        %v1761 = vsel %vm1723, %v1684, %v1685
        %v1762 = vsel %vm1723, %v1683, %v1684
        %v1763 = vsel %vm1723, %v1682, %v1683
        %v1764 = vsel %vm1723, %v1722, %v1682
        %v1765 = vpack.c.bf16 %v1758, %v1759
        %v1766 = vpack.c.bf16 %v1756, %v1757
        %v1767 = vpack.c.bf16 %v1754, %v1755
        %v1768 = vpack.c.bf16 %v1752, %v1753
        %v1769 = vpack.c.bf16 %v1750, %v1751
        %v1770 = vpack.c.bf16 %v1748, %v1749
        %v1771 = vpack.c.bf16 %v1746, %v1747
        %v1772 = vpack.c.bf16 %v1744, %v1745
        %v1773 = vpack.c.bf16 %v1742, %v1743
        %v1774 = vpack.c.bf16 %v1740, %v1741
        %v1775 = vpack.c.bf16 %v1738, %v1739
        %v1776 = vpack.c.bf16 %v1736, %v1737
        %v1777 = vpack.c.bf16 %v1734, %v1735
        %v1778 = vpack.c.bf16 %v1732, %v1733
        %v1779 = vpack.c.bf16 %v1730, %v1731
        %v1780 = vpack.c.bf16 %v1728, %v1729
        %v1781 = vpack.c.bf16 %v1726, %v1727
        %v1782 = vpack.c.bf16 %v1724, %v1725
        %v1783 = vpack.c.bf16 %v1763, %v1764
        %v1784 = vpack.c.bf16 %v1761, %v1762
        %v1785 = vpack.c.bf16 %v1760, %v1760
        %v1786 = vrot.slane %v227, 6
        %v1787 = vrot.slane %v228, 6
        %v1788 = vrot.slane %v229, 6
        %v1789 = vrot.slane %v230, 6
        %v1790 = vrot.slane %v231, 6
        %v1791 = vrot.slane %v232, 6
        %v1792 = vrot.slane %v233, 6
        %v1793 = vrot.slane %v234, 6
        %v1794 = vrot.slane %v235, 6
        %v1795 = vrot.slane %v236, 6
        %v1796 = vrot.slane %v237, 6
        %v1797 = vrot.slane %v238, 6
        %v1798 = vrot.slane %v239, 6
        %v1799 = vrot.slane %v240, 6
        %v1800 = vrot.slane %v241, 6
        %v1801 = vrot.slane %v242, 6
        %v1802 = vrot.slane %v243, 6
        %v1803 = vrot.slane %v244, 6
        %v1804 = vrot.slane %v245, 6
        %v1805 = vrot.slane %v246, 6
        %v1806 = vrot.slane %v247, 6
        %v1807 = vrot.slane %v248, 6
        %v1808 = vrot.slane %v249, 6
        %v1809 = vrot.slane %v250, 6
        %v1810 = vrot.slane %v251, 6
        %v1811 = vrot.slane %v252, 6
        %v1812 = vrot.slane %v253, 6
        %v1813 = vrot.slane %v254, 6
        %v1814 = vrot.slane %v255, 6
        %v1815 = vrot.slane %v256, 6
        %v1816 = vrot.slane %v257, 6
        %v1817 = vrot.slane %v258, 6
        %v1818 = vrot.slane %v259, 6
        %v1819 = vrot.slane %v260, 6
        %v1820 = vrot.slane %v261, 6
        %v1821 = vrot.slane %v262, 6
        %v1822 = vrot.slane %v263, 6
        %v1823 = vrot.slane %v264, 6
        %v1824 = vrot.slane %v265, 6
        %v1825 = vrot.slane %v266, 6
        %v1826 = vrot.slane %v267, 6
        %vm1827 = vcmp.lt.s32.totalorder %v331, 2
        %v1828 = vsel %vm1827, %v1825, %v1826
        %v1829 = vsel %vm1827, %v1824, %v1825
        %v1830 = vsel %vm1827, %v1823, %v1824
        %v1831 = vsel %vm1827, %v1822, %v1823
        %v1832 = vsel %vm1827, %v1821, %v1822
        %v1833 = vsel %vm1827, %v1820, %v1821
        %v1834 = vsel %vm1827, %v1819, %v1820
        %v1835 = vsel %vm1827, %v1818, %v1819
        %v1836 = vsel %vm1827, %v1817, %v1818
        %v1837 = vsel %vm1827, %v1816, %v1817
        %v1838 = vsel %vm1827, %v1815, %v1816
        %v1839 = vsel %vm1827, %v1814, %v1815
        %v1840 = vsel %vm1827, %v1813, %v1814
        %v1841 = vsel %vm1827, %v1812, %v1813
        %v1842 = vsel %vm1827, %v1811, %v1812
        %v1843 = vsel %vm1827, %v1810, %v1811
        %v1844 = vsel %vm1827, %v1809, %v1810
        %v1845 = vsel %vm1827, %v1808, %v1809
        %v1846 = vsel %vm1827, %v1807, %v1808
        %v1847 = vsel %vm1827, %v1806, %v1807
        %v1848 = vsel %vm1827, %v1805, %v1806
        %v1849 = vsel %vm1827, %v1804, %v1805
        %v1850 = vsel %vm1827, %v1803, %v1804
        %v1851 = vsel %vm1827, %v1802, %v1803
        %v1852 = vsel %vm1827, %v1801, %v1802
        %v1853 = vsel %vm1827, %v1800, %v1801
        %v1854 = vsel %vm1827, %v1799, %v1800
        %v1855 = vsel %vm1827, %v1798, %v1799
        %v1856 = vsel %vm1827, %v1797, %v1798
        %v1857 = vsel %vm1827, %v1796, %v1797
        %v1858 = vsel %vm1827, %v1795, %v1796
        %v1859 = vsel %vm1827, %v1794, %v1795
        %v1860 = vsel %vm1827, %v1793, %v1794
        %v1861 = vsel %vm1827, %v1792, %v1793
        %v1862 = vsel %vm1827, %v1791, %v1792
        %v1863 = vsel %vm1827, %v1790, %v1791
        %v1864 = vsel %vm1827, %v1789, %v1790
        %v1865 = vsel %vm1827, %v1788, %v1789
        %v1866 = vsel %vm1827, %v1787, %v1788
        %v1867 = vsel %vm1827, %v1786, %v1787
        %v1868 = vsel %vm1827, %v1826, %v1786
        %v1869 = vpack.c.bf16 %v1862, %v1863
        %v1870 = vpack.c.bf16 %v1860, %v1861
        %v1871 = vpack.c.bf16 %v1858, %v1859
        %v1872 = vpack.c.bf16 %v1856, %v1857
        %v1873 = vpack.c.bf16 %v1854, %v1855
        %v1874 = vpack.c.bf16 %v1852, %v1853
        %v1875 = vpack.c.bf16 %v1850, %v1851
        %v1876 = vpack.c.bf16 %v1848, %v1849
        %v1877 = vpack.c.bf16 %v1846, %v1847
        %v1878 = vpack.c.bf16 %v1844, %v1845
        %v1879 = vpack.c.bf16 %v1842, %v1843
        %v1880 = vpack.c.bf16 %v1840, %v1841
        %v1881 = vpack.c.bf16 %v1838, %v1839
        %v1882 = vpack.c.bf16 %v1836, %v1837
        %v1883 = vpack.c.bf16 %v1834, %v1835
        %v1884 = vpack.c.bf16 %v1832, %v1833
        %v1885 = vpack.c.bf16 %v1830, %v1831
        %v1886 = vpack.c.bf16 %v1828, %v1829
        %v1887 = vpack.c.bf16 %v1867, %v1868
        %v1888 = vpack.c.bf16 %v1865, %v1866
        %v1889 = vpack.c.bf16 %v1864, %v1864
        %1911 = vrot.lane.b32.xlu0 %v1765, 4
        %v1912 = vpop.permute.xlu0 %1911
        %1913 = vrot.lane.b32.xlu0 %v1766, 4
        %v1914 = vpop.permute.xlu0 %1913
        %1915 = vrot.lane.b32.xlu0 %v1767, 4
        %v1916 = vpop.permute.xlu0 %1915
        %1917 = vrot.lane.b32.xlu0 %v1768, 4
        %v1918 = vpop.permute.xlu0 %1917
        %1919 = vrot.lane.b32.xlu0 %v1769, 4
        %v1920 = vpop.permute.xlu0 %1919
        %1921 = vrot.lane.b32.xlu0 %v1770, 4
        %v1922 = vpop.permute.xlu0 %1921
        %1923 = vrot.lane.b32.xlu0 %v1771, 4
        %v1924 = vpop.permute.xlu0 %1923
        %1925 = vrot.lane.b32.xlu0 %v1772, 4
        %v1926 = vpop.permute.xlu0 %1925
        %1927 = vrot.lane.b32.xlu0 %v1773, 4
        %v1928 = vpop.permute.xlu0 %1927
        %1929 = vrot.lane.b32.xlu0 %v1774, 4
        %v1930 = vpop.permute.xlu0 %1929
        %1931 = vrot.lane.b32.xlu0 %v1775, 4
        %v1932 = vpop.permute.xlu0 %1931
        %1933 = vrot.lane.b32.xlu0 %v1776, 4
        %v1934 = vpop.permute.xlu0 %1933
        %1935 = vrot.lane.b32.xlu0 %v1777, 4
        %v1936 = vpop.permute.xlu0 %1935
        %1937 = vrot.lane.b32.xlu0 %v1778, 4
        %v1938 = vpop.permute.xlu0 %1937
        %1939 = vrot.lane.b32.xlu0 %v1779, 4
        %v1940 = vpop.permute.xlu0 %1939
        %1941 = vrot.lane.b32.xlu0 %v1780, 4
        %v1942 = vpop.permute.xlu0 %1941
        %1943 = vrot.lane.b32.xlu0 %v1781, 4
        %v1944 = vpop.permute.xlu0 %1943
        %1945 = vrot.lane.b32.xlu0 %v1782, 4
        %v1946 = vpop.permute.xlu0 %1945
        %1947 = vrot.lane.b32.xlu0 %v1783, 4
        %v1948 = vpop.permute.xlu0 %1947
        %1949 = vrot.lane.b32.xlu0 %v1784, 4
        %v1950 = vpop.permute.xlu0 %1949
        %1951 = vrot.lane.b32.xlu0 %v1785, 4
        %v1952 = vpop.permute.xlu0 %1951
        %1974 = vrot.lane.b32.xlu0 %v1869, 8
        %v1975 = vpop.permute.xlu0 %1974
        %1976 = vrot.lane.b32.xlu0 %v1870, 8
        %v1977 = vpop.permute.xlu0 %1976
        %1978 = vrot.lane.b32.xlu0 %v1871, 8
        %v1979 = vpop.permute.xlu0 %1978
        %1980 = vrot.lane.b32.xlu0 %v1872, 8
        %v1981 = vpop.permute.xlu0 %1980
        %1982 = vrot.lane.b32.xlu0 %v1873, 8
        %v1983 = vpop.permute.xlu0 %1982
        %1984 = vrot.lane.b32.xlu0 %v1874, 8
        %v1985 = vpop.permute.xlu0 %1984
        %1986 = vrot.lane.b32.xlu0 %v1875, 8
        %v1987 = vpop.permute.xlu0 %1986
        %1988 = vrot.lane.b32.xlu0 %v1876, 8
        %v1989 = vpop.permute.xlu0 %1988
        %1990 = vrot.lane.b32.xlu0 %v1877, 8
        %v1991 = vpop.permute.xlu0 %1990
        %1992 = vrot.lane.b32.xlu0 %v1878, 8
        %v1993 = vpop.permute.xlu0 %1992
        %1994 = vrot.lane.b32.xlu0 %v1879, 8
        %v1995 = vpop.permute.xlu0 %1994
        %1996 = vrot.lane.b32.xlu0 %v1880, 8
        %v1997 = vpop.permute.xlu0 %1996
        %1998 = vrot.lane.b32.xlu0 %v1881, 8
        %v1999 = vpop.permute.xlu0 %1998
        %2000 = vrot.lane.b32.xlu0 %v1882, 8
        %v2001 = vpop.permute.xlu0 %2000
        %2002 = vrot.lane.b32.xlu0 %v1883, 8
        %v2003 = vpop.permute.xlu0 %2002
        %2004 = vrot.lane.b32.xlu0 %v1884, 8
        %v2005 = vpop.permute.xlu0 %2004
        %2006 = vrot.lane.b32.xlu0 %v1885, 8
        %v2007 = vpop.permute.xlu0 %2006
        %2008 = vrot.lane.b32.xlu0 %v1886, 8
        %v2009 = vpop.permute.xlu0 %2008
        %2010 = vrot.lane.b32.xlu0 %v1887, 8
        %v2011 = vpop.permute.xlu0 %2010
        %2012 = vrot.lane.b32.xlu0 %v1888, 8
        %v2013 = vpop.permute.xlu0 %2012
        %2014 = vrot.lane.b32.xlu0 %v1889, 8
        %v2015 = vpop.permute.xlu0 %2014
        %v2018 = vsel %vm625, %v924, %v1912
        %v2021 = vsel %vm625, %v925, %v1914
        %v2024 = vsel %vm625, %v926, %v1916
        %v2027 = vsel %vm625, %v927, %v1918
        %v2030 = vsel %vm625, %v928, %v1920
        %v2033 = vsel %vm625, %v929, %v1922
        %v2036 = vsel %vm625, %v930, %v1924
        %v2039 = vsel %vm625, %v931, %v1926
        %v2042 = vsel %vm625, %v932, %v1928
        %v2045 = vsel %vm625, %v933, %v1930
        %v2048 = vsel %vm625, %v934, %v1932
        %v2051 = vsel %vm625, %v935, %v1934
        %v2054 = vsel %vm625, %v936, %v1936
        %v2057 = vsel %vm625, %v937, %v1938
        %v2060 = vsel %vm625, %v938, %v1940
        %v2063 = vsel %vm625, %v939, %v1942
        %v2066 = vsel %vm625, %v940, %v1944
        %v2069 = vsel %vm625, %v941, %v1946
        %v2072 = vsel %vm625, %v942, %v1948
        %v2075 = vsel %vm625, %v1680, %v1950
        %v2078 = vsel %vm625, %v1681, %v1952
        %v2080 = vsel %vm689, %v2018, %v1975
        %v2082 = vsel %vm689, %v2021, %v1977
        %v2084 = vsel %vm689, %v2024, %v1979
        %v2086 = vsel %vm689, %v2027, %v1981
        %v2088 = vsel %vm689, %v2030, %v1983
        %v2090 = vsel %vm689, %v2033, %v1985
        %v2092 = vsel %vm689, %v2036, %v1987
        %v2094 = vsel %vm689, %v2039, %v1989
        %v2096 = vsel %vm689, %v2042, %v1991
        %v2098 = vsel %vm689, %v2045, %v1993
        %v2100 = vsel %vm689, %v2048, %v1995
        %v2102 = vsel %vm689, %v2051, %v1997
        %v2104 = vsel %vm689, %v2054, %v1999
        %v2106 = vsel %vm689, %v2057, %v2001
        %v2108 = vsel %vm689, %v2060, %v2003
        %v2110 = vsel %vm689, %v2063, %v2005
        %v2112 = vsel %vm689, %v2066, %v2007
        %v2114 = vsel %vm689, %v2069, %v2009
        %v2116 = vsel %vm689, %v2072, %v2011
        %v2118 = vsel %vm689, %v2075, %v2013
        %v2120 = vsel %vm689, %v2078, %v2015
        %s2121 = scalar_lea.vmem %s1, 16
        %v2122 = vld [vmem:[%s2121] sm:$0xf]
        %v2123 = vld [vmem:[%s2121 + $0x4] sm:$0x3]
        %v2126 = vunpack.c.l.b16 %v2122
        %v2127 = vunpack.c.l.b16 %v2123
        %v2128 = vpack.c.b16 %v2127, %v2126
        %v2129 = vsel %vm1183, %v2080, 0
        %v2131 = vsel %vm1183, %v2082, 0
        %v2133 = vsel %vm1183, %v2084, 0
        %v2135 = vsel %vm1183, %v2086, 0
        %v2137 = vsel %vm1183, %v2088, 0
        %v2139 = vsel %vm1183, %v2090, 0
        %v2141 = vsel %vm1183, %v2092, 0
        %v2143 = vsel %vm1183, %v2094, 0
        %v2145 = vsel %vm1183, %v2096, 0
        %v2147 = vsel %vm1183, %v2098, 0
        %v2149 = vsel %vm1183, %v2100, 0
        %v2151 = vsel %vm1183, %v2102, 0
        %v2153 = vsel %vm1183, %v2104, 0
        %v2155 = vsel %vm1183, %v2106, 0
        %v2157 = vsel %vm1183, %v2108, 0
        %v2159 = vsel %vm1183, %v2110, 0
        %v2161 = vsel %vm1183, %v2112, 0
        %v2163 = vsel %vm1183, %v2114, 0
        %v2165 = vsel %vm1183, %v2116, 0
        %v2167 = vsel %vm1183, %v2118, 0
        %v2169 = vsel %vm1183, %v2120, 0
        %v2172 = vsel %vm1226, %v2128, 0
        %2174 = vmatprep.subr.bf16.mxu0 0
        %2175 = vmatpush1.bf16.msra.mxu0 %v2172
        %2176 = vmatprep.subr.bf16.mxu0 0
        %2177 = vmatpush1.bf16.msra.mxu0 0
        %2178 = vmatprep.subr.bf16.mxu0 0
        %2179 = vmatpush1.bf16.msra.mxu0 0
        %2180 = vmatprep.subr.bf16.mxu0 0
        %2181 = vmatpush1.bf16.msra.mxu0 0
        %2182 = vmatprep.subr.bf16.mxu0 0
        %2183 = vmatpush1.bf16.msra.mxu0 0
        %2184 = vmatprep.subr.bf16.mxu0 0
        %2185 = vmatpush1.bf16.msra.mxu0 0
        %2186 = vmatprep.subr.bf16.mxu0 0
        %2187 = vmatpush1.bf16.msra.mxu0 0
        %2188 = vmatprep.subr.bf16.mxu0 0
        %2189 = vmatpush1.bf16.msra.mxu0 0
        %2190 = vmatprep.subr.bf16.mxu0 0
        %2191 = vmatpush1.bf16.msra.mxu0 0
        %2192 = vmatprep.subr.bf16.mxu0 0
        %2193 = vmatpush1.bf16.msra.mxu0 0
        %2194 = vmatprep.subr.bf16.mxu0 0
        %2195 = vmatpush1.bf16.msra.mxu0 0
        %2196 = vmatprep.subr.bf16.mxu0 0
        %2197 = vmatpush1.bf16.msra.mxu0 0
        %2198 = vmatprep.subr.bf16.mxu0 0
        %2199 = vmatpush1.bf16.msra.mxu0 0
        %2200 = vmatprep.subr.bf16.mxu0 0
        %2201 = vmatpush1.bf16.msra.mxu0 0
        %2202 = vmatprep.subr.bf16.mxu0 0
        %2203 = vmatpush1.bf16.msra.mxu0 0
        %2204 = vmatprep.subr.bf16.mxu0 0
        %2205 = vmatpush1.bf16.msra.mxu0 0
        %2206 = vmatprep.mubr.bf16.mxu0 0
        %2207 = vmatmul.mubr.bf16.gmra.mrb[0].mxu0 %v2129
        %v2208 = vpop.f32.mrb[0].mxu0
        %v2209 = vadd.f32 0.0, %v2208
        %v2210 = vpop.f32.mrb[0].mxu0
        %v2211 = vpop.f32.mrb[0].mxu0
        %v2212 = vadd.f32 0.0, %v2211
        %v2213 = vpop.f32.mrb[0].mxu0
        %2214 = vmatprep.mubr.bf16.mxu0 0
        %2215 = vmatmul.mubr.bf16.gmra.mrb[0].mxu0 %v2131
        %v2216 = vpop.f32.mrb[0].mxu0
        %v2217 = vadd.f32 0.0, %v2216
        %v2218 = vpop.f32.mrb[0].mxu0
        %v2219 = vpop.f32.mrb[0].mxu0
        %v2220 = vadd.f32 0.0, %v2219
        %v2221 = vpop.f32.mrb[0].mxu0
        %2222 = vmatprep.mubr.bf16.mxu0 0
        %2223 = vmatmul.mubr.bf16.gmra.mrb[0].mxu0 %v2133
        %v2224 = vpop.f32.mrb[0].mxu0
        %v2225 = vadd.f32 0.0, %v2224
        %v2226 = vpop.f32.mrb[0].mxu0
        %v2227 = vpop.f32.mrb[0].mxu0
        %v2228 = vadd.f32 0.0, %v2227
        %v2229 = vpop.f32.mrb[0].mxu0
        %2230 = vmatprep.mubr.bf16.mxu0 0
        %2231 = vmatmul.mubr.bf16.gmra.mrb[0].mxu0 %v2135
        %v2232 = vpop.f32.mrb[0].mxu0
        %v2233 = vadd.f32 0.0, %v2232
        %v2234 = vpop.f32.mrb[0].mxu0
        %v2235 = vpop.f32.mrb[0].mxu0
        %v2236 = vadd.f32 0.0, %v2235
        %v2237 = vpop.f32.mrb[0].mxu0
        %2238 = vmatprep.mubr.bf16.mxu0 0
        %2239 = vmatmul.mubr.bf16.gmra.mrb[0].mxu0 %v2137
        %v2240 = vpop.f32.mrb[0].mxu0
        %v2241 = vadd.f32 0.0, %v2240
        %v2242 = vpop.f32.mrb[0].mxu0
        %v2243 = vpop.f32.mrb[0].mxu0
        %v2244 = vadd.f32 0.0, %v2243
        %v2245 = vpop.f32.mrb[0].mxu0
        %2246 = vmatprep.mubr.bf16.mxu0 0
        %2247 = vmatmul.mubr.bf16.gmra.mrb[0].mxu0 %v2139
        %v2248 = vpop.f32.mrb[0].mxu0
        %v2249 = vadd.f32 0.0, %v2248
        %v2250 = vpop.f32.mrb[0].mxu0
        %v2251 = vpop.f32.mrb[0].mxu0
        %v2252 = vadd.f32 0.0, %v2251
        %v2253 = vpop.f32.mrb[0].mxu0
        %2254 = vmatprep.mubr.bf16.mxu0 0
        %2255 = vmatmul.mubr.bf16.gmra.mrb[0].mxu0 %v2141
        %v2256 = vpop.f32.mrb[0].mxu0
        %v2257 = vadd.f32 0.0, %v2256
        %v2258 = vpop.f32.mrb[0].mxu0
        %v2259 = vpop.f32.mrb[0].mxu0
        %v2260 = vadd.f32 0.0, %v2259
        %v2261 = vpop.f32.mrb[0].mxu0
        %2262 = vmatprep.mubr.bf16.mxu0 0
        %2263 = vmatmul.mubr.bf16.gmra.mrb[0].mxu0 %v2143
        %v2264 = vpop.f32.mrb[0].mxu0
        %v2265 = vadd.f32 0.0, %v2264
        %v2266 = vpop.f32.mrb[0].mxu0
        %v2267 = vpop.f32.mrb[0].mxu0
        %v2268 = vadd.f32 0.0, %v2267
        %v2269 = vpop.f32.mrb[0].mxu0
        %2270 = vmatprep.mubr.bf16.mxu0 0
        %2271 = vmatmul.mubr.bf16.gmra.mrb[0].mxu0 %v2145
        %v2272 = vpop.f32.mrb[0].mxu0
        %v2273 = vadd.f32 0.0, %v2272
        %v2274 = vpop.f32.mrb[0].mxu0
        %v2275 = vpop.f32.mrb[0].mxu0
        %v2276 = vadd.f32 0.0, %v2275
        %v2277 = vpop.f32.mrb[0].mxu0
        %2278 = vmatprep.mubr.bf16.mxu0 0
        %2279 = vmatmul.mubr.bf16.gmra.mrb[0].mxu0 %v2147
        %v2280 = vpop.f32.mrb[0].mxu0
        %v2281 = vadd.f32 0.0, %v2280
        %v2282 = vpop.f32.mrb[0].mxu0
        %v2283 = vpop.f32.mrb[0].mxu0
        %v2284 = vadd.f32 0.0, %v2283
        %v2285 = vpop.f32.mrb[0].mxu0
        %2286 = vmatprep.mubr.bf16.mxu0 0
        %2287 = vmatmul.mubr.bf16.gmra.mrb[0].mxu0 %v2149
        %v2288 = vpop.f32.mrb[0].mxu0
        %v2289 = vadd.f32 0.0, %v2288
        %v2290 = vpop.f32.mrb[0].mxu0
        %v2291 = vpop.f32.mrb[0].mxu0
        %v2292 = vadd.f32 0.0, %v2291
        %v2293 = vpop.f32.mrb[0].mxu0
        %2294 = vmatprep.mubr.bf16.mxu0 0
        %2295 = vmatmul.mubr.bf16.gmra.mrb[0].mxu0 %v2151
        %v2296 = vpop.f32.mrb[0].mxu0
        %v2297 = vadd.f32 0.0, %v2296
        %v2298 = vpop.f32.mrb[0].mxu0
        %v2299 = vpop.f32.mrb[0].mxu0
        %v2300 = vadd.f32 0.0, %v2299
        %v2301 = vpop.f32.mrb[0].mxu0
        %2302 = vmatprep.mubr.bf16.mxu0 0
        %2303 = vmatmul.mubr.bf16.gmra.mrb[0].mxu0 %v2153
        %v2304 = vpop.f32.mrb[0].mxu0
        %v2305 = vadd.f32 0.0, %v2304
        %v2306 = vpop.f32.mrb[0].mxu0
        %v2307 = vpop.f32.mrb[0].mxu0
        %v2308 = vadd.f32 0.0, %v2307
        %v2309 = vpop.f32.mrb[0].mxu0
        %2310 = vmatprep.mubr.bf16.mxu0 0
        %2311 = vmatmul.mubr.bf16.gmra.mrb[0].mxu0 %v2155
        %v2312 = vpop.f32.mrb[0].mxu0
        %v2313 = vadd.f32 0.0, %v2312
        %v2314 = vpop.f32.mrb[0].mxu0
        %v2315 = vpop.f32.mrb[0].mxu0
        %v2316 = vadd.f32 0.0, %v2315
        %v2317 = vpop.f32.mrb[0].mxu0
        %2318 = vmatprep.mubr.bf16.mxu0 0
        %2319 = vmatmul.mubr.bf16.gmra.mrb[0].mxu0 %v2157
        %v2320 = vpop.f32.mrb[0].mxu0
        %v2321 = vadd.f32 0.0, %v2320
        %v2322 = vpop.f32.mrb[0].mxu0
        %v2323 = vpop.f32.mrb[0].mxu0
        %v2324 = vadd.f32 0.0, %v2323
        %v2325 = vpop.f32.mrb[0].mxu0
        %2326 = vmatprep.mubr.bf16.mxu0 0
        %2327 = vmatmul.mubr.bf16.gmra.mrb[0].mxu0 %v2159
        %v2328 = vpop.f32.mrb[0].mxu0
        %v2329 = vadd.f32 0.0, %v2328
        %v2330 = vpop.f32.mrb[0].mxu0
        %v2331 = vpop.f32.mrb[0].mxu0
        %v2332 = vadd.f32 0.0, %v2331
        %v2333 = vpop.f32.mrb[0].mxu0
        %2334 = vmatprep.mubr.bf16.mxu0 0
        %2335 = vmatmul.mubr.bf16.gmra.mrb[0].mxu0 %v2161
        %v2336 = vpop.f32.mrb[0].mxu0
        %v2337 = vadd.f32 0.0, %v2336
        %v2338 = vpop.f32.mrb[0].mxu0
        %v2339 = vpop.f32.mrb[0].mxu0
        %v2340 = vadd.f32 0.0, %v2339
        %v2341 = vpop.f32.mrb[0].mxu0
        %2342 = vmatprep.mubr.bf16.mxu0 0
        %2343 = vmatmul.mubr.bf16.gmra.mrb[0].mxu0 %v2163
        %v2344 = vpop.f32.mrb[0].mxu0
        %v2345 = vadd.f32 0.0, %v2344
        %v2346 = vpop.f32.mrb[0].mxu0
        %v2347 = vpop.f32.mrb[0].mxu0
        %v2348 = vadd.f32 0.0, %v2347
        %v2349 = vpop.f32.mrb[0].mxu0
        %2350 = vmatprep.mubr.bf16.mxu0 0
        %2351 = vmatmul.mubr.bf16.gmra.mrb[0].mxu0 %v2165
        %v2352 = vpop.f32.mrb[0].mxu0
        %v2353 = vadd.f32 0.0, %v2352
        %v2354 = vpop.f32.mrb[0].mxu0
        %v2355 = vpop.f32.mrb[0].mxu0
        %v2356 = vadd.f32 0.0, %v2355
        %v2357 = vpop.f32.mrb[0].mxu0
        %2358 = vmatprep.mubr.bf16.mxu0 0
        %2359 = vmatmul.mubr.bf16.gmra.mrb[0].mxu0 %v2167
        %v2360 = vpop.f32.mrb[0].mxu0
        %v2361 = vadd.f32 0.0, %v2360
        %v2362 = vpop.f32.mrb[0].mxu0
        %v2363 = vpop.f32.mrb[0].mxu0
        %v2364 = vadd.f32 0.0, %v2363
        %v2365 = vpop.f32.mrb[0].mxu0
        %2366 = vmatprep.mubr.bf16.mxu0 0
        %2367 = vmatmul.mubr.bf16.gmra.mrb[0].mxu0 %v2169
        %v2368 = vpop.f32.mrb[0].mxu0
        %v2369 = vadd.f32 0.0, %v2368
        %v2370 = vpop.f32.mrb[0].mxu0
        %v2371 = vpop.f32.mrb[0].mxu0
        %v2372 = vpop.f32.mrb[0].mxu0
        %2373 = vdwg.mxu0
        %v2374 = vadd.f32 %v1515, %v2209
        %v2375 = vadd.f32 %v1518, %v2212
        %v2376 = vadd.f32 %v1523, %v2217
        %v2377 = vadd.f32 %v1526, %v2220
        %v2378 = vadd.f32 %v1531, %v2225
        %v2379 = vadd.f32 %v1534, %v2228
        %v2380 = vadd.f32 %v1539, %v2233
        %v2381 = vadd.f32 %v1542, %v2236
        %v2382 = vadd.f32 %v1547, %v2241
        %v2383 = vadd.f32 %v1550, %v2244
        %v2384 = vadd.f32 %v1555, %v2249
        %v2385 = vadd.f32 %v1558, %v2252
        %v2386 = vadd.f32 %v1563, %v2257
        %v2387 = vadd.f32 %v1566, %v2260
        %v2388 = vadd.f32 %v1571, %v2265
        %v2389 = vadd.f32 %v1574, %v2268
        %v2390 = vadd.f32 %v1579, %v2273
        %v2391 = vadd.f32 %v1582, %v2276
        %v2392 = vadd.f32 %v1587, %v2281
        %v2393 = vadd.f32 %v1590, %v2284
        %v2394 = vadd.f32 %v1595, %v2289
        %v2395 = vadd.f32 %v1598, %v2292
        %v2396 = vadd.f32 %v1603, %v2297
        %v2397 = vadd.f32 %v1606, %v2300
        %v2398 = vadd.f32 %v1611, %v2305
        %v2399 = vadd.f32 %v1614, %v2308
        %v2400 = vadd.f32 %v1619, %v2313
        %v2401 = vadd.f32 %v1622, %v2316
        %v2402 = vadd.f32 %v1627, %v2321
        %v2403 = vadd.f32 %v1630, %v2324
        %v2404 = vadd.f32 %v1635, %v2329
        %v2405 = vadd.f32 %v1638, %v2332
        %v2406 = vadd.f32 %v1643, %v2337
        %v2407 = vadd.f32 %v1646, %v2340
        %v2408 = vadd.f32 %v1651, %v2345
        %v2409 = vadd.f32 %v1654, %v2348
        %v2410 = vadd.f32 %v1659, %v2353
        %v2411 = vadd.f32 %v1662, %v2356
        %v2412 = vadd.f32 %v1667, %v2361
        %v2413 = vadd.f32 %v1670, %v2364
        %v2414 = vadd.f32 %v1675, %v2369
        %v2415 = vld [vmem:[%s2] sm:$0x1]
        %v2417 = vlaneseq
        %v2418 = vshrl.u32 %v2417, 7
        %v2419 = vsub.s32 0, %v2418
        %v2420 = vrot.slane %v2415, %v2419
        %v2422 = vadd.f32 %v2374, %v2420
        %v2423 = vadd.f32 %v2375, %v2420
        %v2424 = vadd.f32 %v2376, %v2420
        %v2425 = vadd.f32 %v2377, %v2420
        %v2426 = vadd.f32 %v2378, %v2420
        %v2427 = vadd.f32 %v2379, %v2420
        %v2428 = vadd.f32 %v2380, %v2420
        %v2429 = vadd.f32 %v2381, %v2420
        %v2430 = vadd.f32 %v2382, %v2420
        %v2431 = vadd.f32 %v2383, %v2420
        %v2432 = vadd.f32 %v2384, %v2420
        %v2433 = vadd.f32 %v2385, %v2420
        %v2434 = vadd.f32 %v2386, %v2420
        %v2435 = vadd.f32 %v2387, %v2420
        %v2436 = vadd.f32 %v2388, %v2420
        %v2437 = vadd.f32 %v2389, %v2420
        %v2438 = vadd.f32 %v2390, %v2420
        %v2439 = vadd.f32 %v2391, %v2420
        %v2440 = vadd.f32 %v2392, %v2420
        %v2441 = vadd.f32 %v2393, %v2420
        %v2442 = vadd.f32 %v2394, %v2420
        %v2443 = vadd.f32 %v2395, %v2420
        %v2444 = vadd.f32 %v2396, %v2420
        %v2445 = vadd.f32 %v2397, %v2420
        %v2446 = vadd.f32 %v2398, %v2420
        %v2447 = vadd.f32 %v2399, %v2420
        %v2448 = vadd.f32 %v2400, %v2420
        %v2449 = vadd.f32 %v2401, %v2420
        %v2450 = vadd.f32 %v2402, %v2420
        %v2451 = vadd.f32 %v2403, %v2420
        %v2452 = vadd.f32 %v2404, %v2420
        %v2453 = vadd.f32 %v2405, %v2420
        %v2454 = vadd.f32 %v2406, %v2420
        %v2455 = vadd.f32 %v2407, %v2420
        %v2456 = vadd.f32 %v2408, %v2420
        %v2457 = vadd.f32 %v2409, %v2420
        %v2458 = vadd.f32 %v2410, %v2420
        %v2459 = vadd.f32 %v2411, %v2420
        %v2460 = vadd.f32 %v2412, %v2420
        %v2461 = vadd.f32 %v2413, %v2420
        %v2462 = vadd.f32 %v2414, %v2420
        %v2463 = vmax.f32 %v2422, 0.0
        %v2464 = vmax.f32 %v2423, 0.0
        %v2465 = vmax.f32 %v2424, 0.0
        %v2466 = vmax.f32 %v2425, 0.0
        %v2467 = vmax.f32 %v2426, 0.0
        %v2468 = vmax.f32 %v2427, 0.0
        %v2469 = vmax.f32 %v2428, 0.0
        %v2470 = vmax.f32 %v2429, 0.0
        %v2471 = vmax.f32 %v2430, 0.0
        %v2472 = vmax.f32 %v2431, 0.0
        %v2473 = vmax.f32 %v2432, 0.0
        %v2474 = vmax.f32 %v2433, 0.0
        %v2475 = vmax.f32 %v2434, 0.0
        %v2476 = vmax.f32 %v2435, 0.0
        %v2477 = vmax.f32 %v2436, 0.0
        %v2478 = vmax.f32 %v2437, 0.0
        %v2479 = vmax.f32 %v2438, 0.0
        %v2480 = vmax.f32 %v2439, 0.0
        %v2481 = vmax.f32 %v2440, 0.0
        %v2482 = vmax.f32 %v2441, 0.0
        %v2483 = vmax.f32 %v2442, 0.0
        %v2484 = vmax.f32 %v2443, 0.0
        %v2485 = vmax.f32 %v2444, 0.0
        %v2486 = vmax.f32 %v2445, 0.0
        %v2487 = vmax.f32 %v2446, 0.0
        %v2488 = vmax.f32 %v2447, 0.0
        %v2489 = vmax.f32 %v2448, 0.0
        %v2490 = vmax.f32 %v2449, 0.0
        %v2491 = vmax.f32 %v2450, 0.0
        %v2492 = vmax.f32 %v2451, 0.0
        %v2493 = vmax.f32 %v2452, 0.0
        %v2494 = vmax.f32 %v2453, 0.0
        %v2495 = vmax.f32 %v2454, 0.0
        %v2496 = vmax.f32 %v2455, 0.0
        %v2497 = vmax.f32 %v2456, 0.0
        %v2498 = vmax.f32 %v2457, 0.0
        %v2499 = vmax.f32 %v2458, 0.0
        %v2500 = vmax.f32 %v2459, 0.0
        %v2501 = vmax.f32 %v2460, 0.0
        %v2502 = vmax.f32 %v2461, 0.0
        %v2503 = vmax.f32 %v2462, 0.0
        %v2504 = vpack.c.bf16 %v2464, %v2463
        %v2505 = vpack.c.bf16 %v2466, %v2465
        %v2506 = vpack.c.bf16 %v2468, %v2467
        %v2507 = vpack.c.bf16 %v2470, %v2469
        %v2508 = vpack.c.bf16 %v2472, %v2471
        %v2509 = vpack.c.bf16 %v2474, %v2473
        %v2510 = vpack.c.bf16 %v2476, %v2475
        %v2511 = vpack.c.bf16 %v2478, %v2477
        %v2512 = vpack.c.bf16 %v2480, %v2479
        %v2513 = vpack.c.bf16 %v2482, %v2481
        %v2514 = vpack.c.bf16 %v2484, %v2483
        %v2515 = vpack.c.bf16 %v2486, %v2485
        %v2516 = vpack.c.bf16 %v2488, %v2487
        %v2517 = vpack.c.bf16 %v2490, %v2489
        %v2518 = vpack.c.bf16 %v2492, %v2491
        %v2519 = vpack.c.bf16 %v2494, %v2493
        %v2520 = vpack.c.bf16 %v2496, %v2495
        %v2521 = vpack.c.bf16 %v2498, %v2497
        %v2522 = vpack.c.bf16 %v2500, %v2499
        %v2523 = vpack.c.bf16 %v2502, %v2501
        %v2524 = vpack.c.bf16 %v2503, %v2503
        %v2525 = vld [vmem:[%s3] sm:$0xf]
        %v2526 = vld [vmem:[%s3 + $0x4] sm:$0xf]
        %v2527 = vld [vmem:[%s3 + $0x8] sm:$0xf]
        %v2528 = vld [vmem:[%s3 + $0xc] sm:$0xf]
        %v2529 = vld [vmem:[%s4] sm:$0x1]
        %v2531 = vlaneseq
        %v2532 = vshrl.u32 %v2531, 7
        %v2533 = vsub.s32 0, %v2532
        %v2534 = vrot.slane %v2529, %v2533
        %v2540 = vunpack.c.l.b16 %v2525
        %v2541 = vunpack.c.l.b16 %v2526
        %v2542 = vunpack.c.l.b16 %v2527
        %v2543 = vunpack.c.l.b16 %v2528
        %v2544 = vpack.c.b16 %v2541, %v2540
        %v2545 = vpack.c.b16 %v2543, %v2542
        %vm2548 = vcmask 261120
        %v2550 = vsel %vm2548, %v2504, 0
        %v2553 = vsel %vm2548, %v2505, 0
        %v2556 = vsel %vm2548, %v2506, 0
        %v2559 = vsel %vm2548, %v2507, 0
        %v2562 = vsel %vm2548, %v2508, 0
        %v2565 = vsel %vm2548, %v2509, 0
        %v2568 = vsel %vm2548, %v2510, 0
        %v2571 = vsel %vm2548, %v2511, 0
        %v2574 = vsel %vm2548, %v2512, 0
        %v2577 = vsel %vm2548, %v2513, 0
        %v2580 = vsel %vm2548, %v2514, 0
        %v2583 = vsel %vm2548, %v2515, 0
        %v2586 = vsel %vm2548, %v2516, 0
        %v2589 = vsel %vm2548, %v2517, 0
        %v2592 = vsel %vm2548, %v2518, 0
        %v2595 = vsel %vm2548, %v2519, 0
        %v2598 = vsel %vm2548, %v2520, 0
        %v2601 = vsel %vm2548, %v2521, 0
        %v2604 = vsel %vm2548, %v2522, 0
        %v2607 = vsel %vm2548, %v2523, 0
        %v2610 = vsel %vm2548, %v2524, 0
        %2612 = vmatprep.subr.bf16.mxu0 0
        %2613 = vmatpush1.bf16.msra.mxu0 %v2544
        %2614 = vmatprep.subr.bf16.mxu0 0
        %2615 = vmatpush1.bf16.msra.mxu0 %v2545
        %2616 = vmatprep.subr.bf16.mxu0 0
        %2617 = vmatpush1.bf16.msra.mxu0 0
        %2618 = vmatprep.subr.bf16.mxu0 0
        %2619 = vmatpush1.bf16.msra.mxu0 0
        %2620 = vmatprep.subr.bf16.mxu0 0
        %2621 = vmatpush1.bf16.msra.mxu0 0
        %2622 = vmatprep.subr.bf16.mxu0 0
        %2623 = vmatpush1.bf16.msra.mxu0 0
        %2624 = vmatprep.subr.bf16.mxu0 0
        %2625 = vmatpush1.bf16.msra.mxu0 0
        %2626 = vmatprep.subr.bf16.mxu0 0
        %2627 = vmatpush1.bf16.msra.mxu0 0
        %2628 = vmatprep.subr.bf16.mxu0 0
        %2629 = vmatpush1.bf16.msra.mxu0 0
        %2630 = vmatprep.subr.bf16.mxu0 0
        %2631 = vmatpush1.bf16.msra.mxu0 0
        %2632 = vmatprep.subr.bf16.mxu0 0
        %2633 = vmatpush1.bf16.msra.mxu0 0
        %2634 = vmatprep.subr.bf16.mxu0 0
        %2635 = vmatpush1.bf16.msra.mxu0 0
        %2636 = vmatprep.subr.bf16.mxu0 0
        %2637 = vmatpush1.bf16.msra.mxu0 0
        %2638 = vmatprep.subr.bf16.mxu0 0
        %2639 = vmatpush1.bf16.msra.mxu0 0
        %2640 = vmatprep.subr.bf16.mxu0 0
        %2641 = vmatpush1.bf16.msra.mxu0 0
        %2642 = vmatprep.subr.bf16.mxu0 0
        %2643 = vmatpush1.bf16.msra.mxu0 0
        %2644 = vmatprep.mubr.bf16.mxu0 0
        %2645 = vmatmul.mubr.bf16.gmra.mrb[0].mxu0 %v2550
        %v2646 = vpop.f32.mrb[0].mxu0
        %v2647 = vadd.f32 %v2534, %v2646
        %v2648 = vpop.f32.mrb[0].mxu0
        %v2649 = vpop.f32.mrb[0].mxu0
        %v2650 = vadd.f32 %v2534, %v2649
        %v2651 = vpop.f32.mrb[0].mxu0
        %2652 = vmatprep.mubr.bf16.mxu0 0
        %2653 = vmatmul.mubr.bf16.gmra.mrb[0].mxu0 %v2553
        %v2654 = vpop.f32.mrb[0].mxu0
        %v2655 = vadd.f32 %v2534, %v2654
        %v2656 = vpop.f32.mrb[0].mxu0
        %v2657 = vpop.f32.mrb[0].mxu0
        %v2658 = vadd.f32 %v2534, %v2657
        %v2659 = vpop.f32.mrb[0].mxu0
        %2660 = vmatprep.mubr.bf16.mxu0 0
        %2661 = vmatmul.mubr.bf16.gmra.mrb[0].mxu0 %v2556
        %v2662 = vpop.f32.mrb[0].mxu0
        %v2663 = vadd.f32 %v2534, %v2662
        %v2664 = vpop.f32.mrb[0].mxu0
        %v2665 = vpop.f32.mrb[0].mxu0
        %v2666 = vadd.f32 %v2534, %v2665
        %v2667 = vpop.f32.mrb[0].mxu0
        %2668 = vmatprep.mubr.bf16.mxu0 0
        %2669 = vmatmul.mubr.bf16.gmra.mrb[0].mxu0 %v2559
        %v2670 = vpop.f32.mrb[0].mxu0
        %v2671 = vadd.f32 %v2534, %v2670
        %v2672 = vpop.f32.mrb[0].mxu0
        %v2673 = vpop.f32.mrb[0].mxu0
        %v2674 = vadd.f32 %v2534, %v2673
        %v2675 = vpop.f32.mrb[0].mxu0
        %2676 = vmatprep.mubr.bf16.mxu0 0
        %2677 = vmatmul.mubr.bf16.gmra.mrb[0].mxu0 %v2562
        %v2678 = vpop.f32.mrb[0].mxu0
        %v2679 = vadd.f32 %v2534, %v2678
        %v2680 = vpop.f32.mrb[0].mxu0
        %v2681 = vpop.f32.mrb[0].mxu0
        %v2682 = vadd.f32 %v2534, %v2681
        %v2683 = vpop.f32.mrb[0].mxu0
        %2684 = vmatprep.mubr.bf16.mxu0 0
        %2685 = vmatmul.mubr.bf16.gmra.mrb[0].mxu0 %v2565
        %v2686 = vpop.f32.mrb[0].mxu0
        %v2687 = vadd.f32 %v2534, %v2686
        %v2688 = vpop.f32.mrb[0].mxu0
        %v2689 = vpop.f32.mrb[0].mxu0
        %v2690 = vadd.f32 %v2534, %v2689
        %v2691 = vpop.f32.mrb[0].mxu0
        %2692 = vmatprep.mubr.bf16.mxu0 0
        %2693 = vmatmul.mubr.bf16.gmra.mrb[0].mxu0 %v2568
        %v2694 = vpop.f32.mrb[0].mxu0
        %v2695 = vadd.f32 %v2534, %v2694
        %v2696 = vpop.f32.mrb[0].mxu0
        %v2697 = vpop.f32.mrb[0].mxu0
        %v2698 = vadd.f32 %v2534, %v2697
        %v2699 = vpop.f32.mrb[0].mxu0
        %2700 = vmatprep.mubr.bf16.mxu0 0
        %2701 = vmatmul.mubr.bf16.gmra.mrb[0].mxu0 %v2571
        %v2702 = vpop.f32.mrb[0].mxu0
        %v2703 = vadd.f32 %v2534, %v2702
        %v2704 = vpop.f32.mrb[0].mxu0
        %v2705 = vpop.f32.mrb[0].mxu0
        %v2706 = vadd.f32 %v2534, %v2705
        %v2707 = vpop.f32.mrb[0].mxu0
        %2708 = vmatprep.mubr.bf16.mxu0 0
        %2709 = vmatmul.mubr.bf16.gmra.mrb[0].mxu0 %v2574
        %v2710 = vpop.f32.mrb[0].mxu0
        %v2711 = vadd.f32 %v2534, %v2710
        %v2712 = vpop.f32.mrb[0].mxu0
        %v2713 = vpop.f32.mrb[0].mxu0
        %v2714 = vadd.f32 %v2534, %v2713
        %v2715 = vpop.f32.mrb[0].mxu0
        %2716 = vmatprep.mubr.bf16.mxu0 0
        %2717 = vmatmul.mubr.bf16.gmra.mrb[0].mxu0 %v2577
        %v2718 = vpop.f32.mrb[0].mxu0
        %v2719 = vadd.f32 %v2534, %v2718
        %v2720 = vpop.f32.mrb[0].mxu0
        %v2721 = vpop.f32.mrb[0].mxu0
        %v2722 = vadd.f32 %v2534, %v2721
        %v2723 = vpop.f32.mrb[0].mxu0
        %2724 = vmatprep.mubr.bf16.mxu0 0
        %2725 = vmatmul.mubr.bf16.gmra.mrb[0].mxu0 %v2580
        %v2726 = vpop.f32.mrb[0].mxu0
        %v2727 = vadd.f32 %v2534, %v2726
        %v2728 = vpop.f32.mrb[0].mxu0
        %v2729 = vpop.f32.mrb[0].mxu0
        %v2730 = vadd.f32 %v2534, %v2729
        %v2731 = vpop.f32.mrb[0].mxu0
        %2732 = vmatprep.mubr.bf16.mxu0 0
        %2733 = vmatmul.mubr.bf16.gmra.mrb[0].mxu0 %v2583
        %v2734 = vpop.f32.mrb[0].mxu0
        %v2735 = vadd.f32 %v2534, %v2734
        %v2736 = vpop.f32.mrb[0].mxu0
        %v2737 = vpop.f32.mrb[0].mxu0
        %v2738 = vadd.f32 %v2534, %v2737
        %v2739 = vpop.f32.mrb[0].mxu0
        %2740 = vmatprep.mubr.bf16.mxu0 0
        %2741 = vmatmul.mubr.bf16.gmra.mrb[0].mxu0 %v2586
        %v2742 = vpop.f32.mrb[0].mxu0
        %v2743 = vadd.f32 %v2534, %v2742
        %v2744 = vpop.f32.mrb[0].mxu0
        %v2745 = vpop.f32.mrb[0].mxu0
        %v2746 = vadd.f32 %v2534, %v2745
        %v2747 = vpop.f32.mrb[0].mxu0
        %2748 = vmatprep.mubr.bf16.mxu0 0
        %2749 = vmatmul.mubr.bf16.gmra.mrb[0].mxu0 %v2589
        %v2750 = vpop.f32.mrb[0].mxu0
        %v2751 = vadd.f32 %v2534, %v2750
        %v2752 = vpop.f32.mrb[0].mxu0
        %v2753 = vpop.f32.mrb[0].mxu0
        %v2754 = vadd.f32 %v2534, %v2753
        %v2755 = vpop.f32.mrb[0].mxu0
        %2756 = vmatprep.mubr.bf16.mxu0 0
        %2757 = vmatmul.mubr.bf16.gmra.mrb[0].mxu0 %v2592
        %v2758 = vpop.f32.mrb[0].mxu0
        %v2759 = vadd.f32 %v2534, %v2758
        %v2760 = vpop.f32.mrb[0].mxu0
        %v2761 = vpop.f32.mrb[0].mxu0
        %v2762 = vadd.f32 %v2534, %v2761
        %v2763 = vpop.f32.mrb[0].mxu0
        %2764 = vmatprep.mubr.bf16.mxu0 0
        %2765 = vmatmul.mubr.bf16.gmra.mrb[0].mxu0 %v2595
        %v2766 = vpop.f32.mrb[0].mxu0
        %v2767 = vadd.f32 %v2534, %v2766
        %v2768 = vpop.f32.mrb[0].mxu0
        %v2769 = vpop.f32.mrb[0].mxu0
        %v2770 = vadd.f32 %v2534, %v2769
        %v2771 = vpop.f32.mrb[0].mxu0
        %2772 = vmatprep.mubr.bf16.mxu0 0
        %2773 = vmatmul.mubr.bf16.gmra.mrb[0].mxu0 %v2598
        %v2774 = vpop.f32.mrb[0].mxu0
        %v2775 = vadd.f32 %v2534, %v2774
        %v2776 = vpop.f32.mrb[0].mxu0
        %v2777 = vpop.f32.mrb[0].mxu0
        %v2778 = vadd.f32 %v2534, %v2777
        %v2779 = vpop.f32.mrb[0].mxu0
        %2780 = vmatprep.mubr.bf16.mxu0 0
        %2781 = vmatmul.mubr.bf16.gmra.mrb[0].mxu0 %v2601
        %v2782 = vpop.f32.mrb[0].mxu0
        %v2783 = vadd.f32 %v2534, %v2782
        %v2784 = vpop.f32.mrb[0].mxu0
        %v2785 = vpop.f32.mrb[0].mxu0
        %v2786 = vadd.f32 %v2534, %v2785
        %v2787 = vpop.f32.mrb[0].mxu0
        %2788 = vmatprep.mubr.bf16.mxu0 0
        %2789 = vmatmul.mubr.bf16.gmra.mrb[0].mxu0 %v2604
        %v2790 = vpop.f32.mrb[0].mxu0
        %v2791 = vadd.f32 %v2534, %v2790
        %v2792 = vpop.f32.mrb[0].mxu0
        %v2793 = vpop.f32.mrb[0].mxu0
        %v2794 = vadd.f32 %v2534, %v2793
        %v2795 = vpop.f32.mrb[0].mxu0
        %2796 = vmatprep.mubr.bf16.mxu0 0
        %2797 = vmatmul.mubr.bf16.gmra.mrb[0].mxu0 %v2607
        %v2798 = vpop.f32.mrb[0].mxu0
        %v2799 = vadd.f32 %v2534, %v2798
        %v2800 = vpop.f32.mrb[0].mxu0
        %v2801 = vpop.f32.mrb[0].mxu0
        %v2802 = vadd.f32 %v2534, %v2801
        %v2803 = vpop.f32.mrb[0].mxu0
        %2804 = vmatprep.mubr.bf16.mxu0 0
        %2805 = vmatmul.mubr.bf16.gmra.mrb[0].mxu0 %v2610
        %v2806 = vpop.f32.mrb[0].mxu0
        %v2807 = vadd.f32 %v2534, %v2806
        %v2808 = vpop.f32.mrb[0].mxu0
        %v2809 = vpop.f32.mrb[0].mxu0
        %v2810 = vpop.f32.mrb[0].mxu0
        %2811 = vdwg.mxu0
        %2812 = vst [vmem:[%s218] sm:$0xff] %v2647
        %2813 = vst [vmem:[%s218 + $0x8] sm:$0xff] %v2650
        %2814 = vst [vmem:[%s218 + $0x10] sm:$0xff] %v2655
        %2815 = vst [vmem:[%s218 + $0x18] sm:$0xff] %v2658
        %2816 = vst [vmem:[%s218 + $0x20] sm:$0xff] %v2663
        %2817 = vst [vmem:[%s218 + $0x28] sm:$0xff] %v2666
        %2818 = vst [vmem:[%s218 + $0x30] sm:$0xff] %v2671
        %2819 = vst [vmem:[%s218 + $0x38] sm:$0xff] %v2674
        %2820 = vst [vmem:[%s218 + $0x40] sm:$0xff] %v2679
        %2821 = vst [vmem:[%s218 + $0x48] sm:$0xff] %v2682
        %2822 = vst [vmem:[%s218 + $0x50] sm:$0xff] %v2687
        %2823 = vst [vmem:[%s218 + $0x58] sm:$0xff] %v2690
        %2824 = vst [vmem:[%s218 + $0x60] sm:$0xff] %v2695
        %2825 = vst [vmem:[%s218 + $0x68] sm:$0xff] %v2698
        %2826 = vst [vmem:[%s218 + $0x70] sm:$0xff] %v2703
        %2827 = vst [vmem:[%s218 + $0x78] sm:$0xff] %v2706
        %2828 = vst [vmem:[%s218 + $0x80] sm:$0xff] %v2711
        %2829 = vst [vmem:[%s218 + $0x88] sm:$0xff] %v2714
        %2830 = vst [vmem:[%s218 + $0x90] sm:$0xff] %v2719
        %2831 = vst [vmem:[%s218 + $0x98] sm:$0xff] %v2722
        %2832 = vst [vmem:[%s218 + $0xa0] sm:$0xff] %v2727
        %2833 = vst [vmem:[%s218 + $0xa8] sm:$0xff] %v2730
        %2834 = vst [vmem:[%s218 + $0xb0] sm:$0xff] %v2735
        %2835 = vst [vmem:[%s218 + $0xb8] sm:$0xff] %v2738
        %2836 = vst [vmem:[%s218 + $0xc0] sm:$0xff] %v2743
        %2837 = vst [vmem:[%s218 + $0xc8] sm:$0xff] %v2746
        %2838 = vst [vmem:[%s218 + $0xd0] sm:$0xff] %v2751
        %2839 = vst [vmem:[%s218 + $0xd8] sm:$0xff] %v2754
        %2840 = vst [vmem:[%s218 + $0xe0] sm:$0xff] %v2759
        %2841 = vst [vmem:[%s218 + $0xe8] sm:$0xff] %v2762
        %2842 = vst [vmem:[%s218 + $0xf0] sm:$0xff] %v2767
        %2843 = vst [vmem:[%s218 + $0xf8] sm:$0xff] %v2770
        %2844 = vst [vmem:[%s218 + $0x100] sm:$0xff] %v2775
        %2845 = vst [vmem:[%s218 + $0x108] sm:$0xff] %v2778
        %2846 = vst [vmem:[%s218 + $0x110] sm:$0xff] %v2783
        %2847 = vst [vmem:[%s218 + $0x118] sm:$0xff] %v2786
        %2848 = vst [vmem:[%s218 + $0x120] sm:$0xff] %v2791
        %2849 = vst [vmem:[%s218 + $0x128] sm:$0xff] %v2794
        %2850 = vst [vmem:[%s218 + $0x130] sm:$0xff] %v2799
        %2851 = vst [vmem:[%s218 + $0x138] sm:$0xff] %v2802
        %2852 = vst [vmem:[%s218 + $0x140] sm:$0xff] %v2807
        %s2853 = sand.u32 %s137, 1
        %s2854 = scalar_lea.sflag [#allocation3], %s2853
        %s2855 = sand.u32 %s137, 1
        %s2856 = smul.addr %s2855, 328
        %s2857 = scalar_lea.vmem [#allocation2], %s2856
        // Predicated region
        $region41: #{tpu_custom_call.1} parent=39 // pred_check
          %p2858 = pneg %p147
        $region42: #{tpu_custom_call.1} parent=39 // pred_check_branch
          %2860 = sbr.rel (%p2858) target = $region44
        $region43: #{tpu_custom_call.1} parent=39 // pred_region
          %s2861 = smul.u32 41, %s19
          %s2863 = ssub.s32 5248, 5248
          %2864 = vsyncadd %s2854, %s2863
          %s2865 = smul.addr %s2861, 128
          %s2866 = scalar_lea.hbm %s5, %s2865
          %s2867 = sshll.u32 %s2857, 4
          %s2868 = int_to_ptr.vmem [resolvable:$true] %s2867
          %2873 = dma.vmem_to_hbm [thread:$0]  %s2868, 5248, %s2866, %s2854, 128, 128, 8
        $region44: #{tpu_custom_call.1} parent=39 // pred_fallthru
          _
      $region40: #{tpu_custom_call.1} parent=5 // pred_fallthru
        _
      %p2874 = scmp.le.s32.totalorder 2, %s14
      // Predicated region
      $region45: #{tpu_custom_call.1} parent=5 // pred_check
        %p2875 = pneg %p2874
      $region46: #{tpu_custom_call.1} parent=5 // pred_check_branch
        %2877 = sbr.rel (%p2875) target = $region48
      $region47: #{tpu_custom_call.1} parent=5 // pred_region
        %s2878 = ssub.s32 %s14, 2
        // Predicated region
        $region49: #{tpu_custom_call.1} parent=47 // pred_check
          %p2879 = pneg %p153
        $region50: #{tpu_custom_call.1} parent=47 // pred_check_branch
          %2881 = sbr.rel (%p2879) target = $region52
        $region51: #{tpu_custom_call.1} parent=47 // pred_region
          %s2882 = sand.u32 %s138, 1
          %s2883 = scalar_lea.sflag [#allocation3], %s2882
          %s2884 = sand.u32 %s138, 1
          %s2885 = smul.addr %s2884, 328
          %s2886 = scalar_lea.vmem [#allocation2], %s2885
          %2887 = dma.done %s2883, 5248
        $region52: #{tpu_custom_call.1} parent=47 // pred_fallthru
          _
      $region48: #{tpu_custom_call.1} parent=5 // pred_fallthru
        _
    $region6: #{tpu_custom_call.1} parent=1 // loop_footer
      %s18 = sadd.s32 1, %s14
    $region7: #{tpu_custom_call.1} parent=1 // loop_footer_branch
      %13 = sbr.rel target = $region3
    $region8: #{tpu_custom_call.1} parent=1 // loop_exit
      _
    %2888 = vsyncpa [#allocation3], 1
    %s2889 = scalar_lea.sflag [#allocation3], 1
    %2890 = vsyncpa %s2889, 1

</llo_original>
